<compile_context>
chip_gen: v5e
topology: v5e:2x2
jax: 0.10.0
libtpu: 0.0.40
codegen_flags: <defaults>
</compile_context>

<pallas_src>
import functools
import math

import numpy as np
import jax
import jax.numpy as jnp
from jax.experimental import pallas as pl
from jax.experimental.pallas import tpu as pltpu


_RESIDENT_WEIGHT_BYTES = 8 * 1024 * 1024   # keep weight resident in VMEM below this
_VMEM_LIMIT = 48 * 1024 * 1024             # <= v7x physical (64 MiB), fine on v5e/v6e


def _round_up(x, m):
    return ((x + m - 1) // m) * m


# --------------------------------------------------------------------------
# Tile-size selection
# --------------------------------------------------------------------------
def _pick_tm(M, cap=512):
    """M tile: multiple of 16 (bf16 sublane packing), divides round_up(M, 16),
    <= cap, and leaves >= 2 grid tiles when M allows (v7x megacore)."""
    Mp = _round_up(M, 16)
    cap = max(16, (min(cap, Mp) // 16) * 16)

    def best_divisor(limit):
        t = 16
        for cand in range(16, limit + 1, 16):
            if Mp % cand == 0:
                t = cand
        return t

    tm = best_divisor(cap)
    if Mp // tm < 2 and Mp >= 32:
        tm = best_divisor(max(16, Mp // 2))
    return tm, Mp


def _resident_tm_cap(K, N, has_res):
    """Largest TM (rows) that keeps per-call VMEM (double-buffered A/out/res, resident
    weight, f32 epilogue temp) under ~40 MB."""
    budget = 40 * 1024 * 1024
    fixed = 2 * K * N * 2                                   # resident bf16 weight (x2 margin)
    per_row = 2 * K * 2 + 2 * N * 2 + (2 * N * 2 if has_res else 0) + N * 4
    cap = (budget - fixed) // max(per_row, 1)
    return int(max(16, min(1024, cap)))


def _pick_tn(N):
    Np = _round_up(N, 128)
    TN = min(512, Np)
    while Np % TN:
        TN -= 128
    return TN, Np


def _pick_kt(K):
    Kp = _round_up(K, 128)
    KT = min(512, Kp)
    while Kp % KT:
        KT -= 128
    return KT, Kp


def _mosaic_params(dims):
    return pltpu.CompilerParams(dimension_semantics=dims,
                                vmem_limit_bytes=_VMEM_LIMIT)


# --------------------------------------------------------------------------
# Fused matmul + BN (+ residual) (+ ReLU) kernels
# --------------------------------------------------------------------------
def _mm_bn_res_kernel(*refs, relu, has_res):
    """Resident-weight path: one M tile per grid step, full K/N block, no K grid."""
    if has_res:
        a_ref, b_ref, s_ref, c_ref, r_ref, o_ref = refs
    else:
        a_ref, b_ref, s_ref, c_ref, o_ref = refs
        r_ref = None
    y = jnp.dot(a_ref[...], b_ref[...], preferred_element_type=jnp.float32)
    y = y * s_ref[...] + c_ref[...]
    if has_res:
        y = y + r_ref[...].astype(jnp.float32)
    if relu:
        y = jnp.maximum(y, 0.0)
    o_ref[...] = y.astype(o_ref.dtype)


def _mm_bn_stream_kernel(*refs, relu, has_res):
    """Fallback: K-gridded accumulation into an f32 VMEM scratch."""
    if has_res:
        a_ref, b_ref, s_ref, c_ref, r_ref, o_ref, acc_ref = refs
    else:
        a_ref, b_ref, s_ref, c_ref, o_ref, acc_ref = refs
        r_ref = None
    k = pl.program_id(2)

    @pl.when(k == 0)
    def _():
        acc_ref[...] = jnp.zeros_like(acc_ref)

    acc_ref[...] += jnp.dot(a_ref[...], b_ref[...], preferred_element_type=jnp.float32)

    @pl.when(k == pl.num_programs(2) - 1)
    def _():
        y = acc_ref[...] * s_ref[...] + c_ref[...]
        if has_res:
            y = y + r_ref[...].astype(jnp.float32)
        if relu:
            y = jnp.maximum(y, 0.0)
        o_ref[...] = y.astype(o_ref.dtype)


def matmul_bn(patches, wmat, scale, bias, residual=None, relu=True):
    """Fused (patches @ wmat) * scale + bias (+ residual), optional ReLU.
    bf16 on the MXU, f32 accumulation / epilogue."""
    M, K = patches.shape
    N = wmat.shape[1]
    has_res = residual is not None

    a = patches.astype(jnp.bfloat16)
    b = wmat.astype(jnp.bfloat16)
    s = scale.astype(jnp.float32)[None, :]
    c = bias.astype(jnp.float32)[None, :]

    # ---- main path: weight resident in VMEM, grid over M only ----
    if K * N * 2 <= _RESIDENT_WEIGHT_BYTES:
        TM, Mp = _pick_tm(M, _resident_tm_cap(K, N, has_res))
        if Mp != M:
            a = jnp.pad(a, ((0, Mp - M), (0, 0)))
        args = [a, b, s, c]
        in_specs = [
            pl.BlockSpec((TM, K), lambda i: (i, 0)),
            pl.BlockSpec((K, N), lambda i: (0, 0)),     # resident weight
            pl.BlockSpec((1, N), lambda i: (0, 0)),
            pl.BlockSpec((1, N), lambda i: (0, 0)),
        ]
        if has_res:
            r = residual.astype(jnp.bfloat16)
            if Mp != M:
                r = jnp.pad(r, ((0, Mp - M), (0, 0)))
            args.append(r)
            in_specs.append(pl.BlockSpec((TM, N), lambda i: (i, 0)))
        out = pl.pallas_call(
            functools.partial(_mm_bn_res_kernel, relu=relu, has_res=has_res),
            out_shape=jax.ShapeDtypeStruct((Mp, N), jnp.bfloat16),
            grid=(Mp // TM,),
            in_specs=in_specs,
            out_specs=pl.BlockSpec((TM, N), lambda i: (i, 0)),
            compiler_params=_mosaic_params(("parallel",)),
        )(*args)
        return out[:M] if Mp != M else out

    # ---- fallback: stream weight over a K grid (not hit by ResNet-101) ----
    TM, Mp = _pick_tm(M, 512)
    TN, Np = _pick_tn(N)
    KT, Kp = _pick_kt(K)
    if (Mp, Kp) != (M, K):
        a = jnp.pad(a, ((0, Mp - M), (0, Kp - K)))
    if (Kp, Np) != (K, N):
        b = jnp.pad(b, ((0, Kp - K), (0, Np - N)))
    if Np != N:
        s = jnp.pad(s, ((0, 0), (0, Np - N)))
        c = jnp.pad(c, ((0, 0), (0, Np - N)))
    args = [a, b, s, c]
    in_specs = [
        pl.BlockSpec((TM, KT), lambda i, j, k: (i, k)),
        pl.BlockSpec((KT, TN), lambda i, j, k: (k, j)),
        pl.BlockSpec((1, TN), lambda i, j, k: (0, j)),
        pl.BlockSpec((1, TN), lambda i, j, k: (0, j)),
    ]
    if has_res:
        r = residual.astype(jnp.bfloat16)
        if (Mp, Np) != (M, N):
            r = jnp.pad(r, ((0, Mp - M), (0, Np - N)))
        args.append(r)
        in_specs.append(pl.BlockSpec((TM, TN), lambda i, j, k: (i, j)))
    out = pl.pallas_call(
        functools.partial(_mm_bn_stream_kernel, relu=relu, has_res=has_res),
        out_shape=jax.ShapeDtypeStruct((Mp, Np), jnp.bfloat16),
        grid=(Mp // TM, Np // TN, Kp // KT),
        in_specs=in_specs,
        out_specs=pl.BlockSpec((TM, TN), lambda i, j, k: (i, j)),
        scratch_shapes=[pltpu.VMEM((TM, TN), jnp.float32)],
        compiler_params=_mosaic_params(("parallel", "parallel", "arbitrary")),
    )(*args)
    if (Mp, Np) != (M, N):
        out = out[:M, :N]
    return out


# --------------------------------------------------------------------------
# Implicit-GEMM 3x3 stride-1 conv + BN + ReLU (no im2col materialization)
# --------------------------------------------------------------------------
def _conv3x3_kernel(xm_ref, xh_ref, w_ref, s_ref, c_ref, o_ref, buf_ref,
                    *, tm, halo_r, cin, wp, relu):
    # Stitch the main rows and the halo rows into one contiguous VMEM window.
    buf_ref[0:tm, :] = xm_ref[...]
    buf_ref[tm:tm + halo_r, :] = xh_ref[...]
    acc = None
    for t in range(9):                      # 9 taps, each a constant row offset
        off = (t // 3) * wp + (t % 3)
        a = buf_ref[pl.ds(off, tm), :]
        wt = w_ref[pl.ds(t * cin, cin), :]
        d = jnp.dot(a, wt, preferred_element_type=jnp.float32)
        acc = d if acc is None else acc + d
    y = acc * s_ref[...] + c_ref[...]
    if relu:
        y = jnp.maximum(y, 0.0)
    o_ref[...] = y.astype(o_ref.dtype)


def conv3x3_s1(x, w, scale, bias, relu=True):
    """3x3, stride 1, padding 1 conv + BN (+ReLU) as an implicit GEMM.

    The spatially-padded activation is flattened to (B*Hp*Wp, Cin); every tap (kh, kw)
    of the 3x3 kernel is then a constant row offset kh*Wp + kw.  Each grid step loads a
    TM-row main block plus a halo block (same array, second BlockSpec) and accumulates
    nine matmuls against the VMEM-resident (9*Cin, Cout) weight.  Outputs on padded
    border positions are garbage and sliced away afterwards.
    """
    B, H, W, Cin = x.shape
    Cout = w.shape[0]
    Hp, Wp = H + 2, W + 2
    xp = jnp.pad(x.astype(jnp.bfloat16), ((0, 0), (1, 1), (1, 1), (0, 0)))
    mext = B * Hp * Wp
    halo = 2 * Wp + 2
    halo_r = _round_up(halo, 128)           # halo block size; must divide TM
    units_cap = max(1, 512 // halo_r)       # cap TM around 512 rows
    units_2 = max(1, -(-mext // (2 * halo_r)))   # aim for >= 2 grid tiles (megacore)
    tm = halo_r * min(units_cap, units_2)
    nsteps = -(-mext // tm)
    rows_pad = nsteps * tm + halo_r

    xf = xp.reshape(mext, Cin)
    xf = jnp.pad(xf, ((0, rows_pad - mext), (0, 0)))
    wmat = jnp.transpose(w, (2, 3, 1, 0)).reshape(9 * Cin, Cout).astype(jnp.bfloat16)
    s = scale.astype(jnp.float32)[None, :]
    c = bias.astype(jnp.float32)[None, :]

    out = pl.pallas_call(
        functools.partial(_conv3x3_kernel, tm=tm, halo_r=halo_r, cin=Cin, wp=Wp,
                          relu=relu),
        out_shape=jax.ShapeDtypeStruct((nsteps * tm, Cout), jnp.bfloat16),
        grid=(nsteps,),
        in_specs=[
            pl.BlockSpec((tm, Cin), lambda i: (i, 0)),                        # main rows
            pl.BlockSpec((halo_r, Cin), lambda i: ((i + 1) * tm // halo_r, 0)),  # halo
            pl.BlockSpec((9 * Cin, Cout), lambda i: (0, 0)),                  # resident W
            pl.BlockSpec((1, Cout), lambda i: (0, 0)),
            pl.BlockSpec((1, Cout), lambda i: (0, 0)),
        ],
        out_specs=pl.BlockSpec((tm, Cout), lambda i: (i, 0)),
        scratch_shapes=[pltpu.VMEM((tm + halo_r, Cin), jnp.bfloat16)],
        compiler_params=_mosaic_params(("parallel",)),
    )(xf, xf, wmat, s, c)

    out = out[:mext].reshape(B, Hp, Wp, Cout)[:, :H, :W, :]
    return out


# --------------------------------------------------------------------------
# MaxPool 3x3 / stride 2 / pad 1 (separable, lane-dense max-of-3 kernel)
# --------------------------------------------------------------------------
def _max3_kernel(a_ref, b_ref, c_ref, o_ref):
    o_ref[...] = jnp.maximum(jnp.maximum(a_ref[...], b_ref[...]), c_ref[...])


def _max3(a, b, c):
    """Elementwise max of three equal-shape lane-dense 2D arrays, tiled over rows."""
    R, Cc = a.shape
    Rp = _round_up(R, 8)
    if Rp != R:
        pad = ((0, Rp - R), (0, 0))
        a, b, c = jnp.pad(a, pad), jnp.pad(b, pad), jnp.pad(c, pad)
    row_bytes = Cc * a.dtype.itemsize * 8       # 4 arrays, double-buffered
    cap = max(8, ((12 << 20) // max(row_bytes, 1)) // 8 * 8)
    TR = min(cap, Rp)
    while Rp % TR:
        TR -= 8
    out = pl.pallas_call(
        _max3_kernel,
        out_shape=jax.ShapeDtypeStruct((Rp, Cc), a.dtype),
        grid=(Rp // TR,),
        in_specs=[pl.BlockSpec((TR, Cc), lambda i: (i, 0))] * 3,
        out_specs=pl.BlockSpec((TR, Cc), lambda i: (i, 0)),
        compiler_params=pltpu.CompilerParams(dimension_semantics=("parallel",)),
    )(a, b, c)
    return out[:R] if Rp != R else out


@jax.jit
def max_pool_3x3_s2_p1(x):
    """MaxPool2d(kernel=3, stride=2, padding=1) on NHWC input, rows then columns.

    Operands are reshaped to lane-dense (rows, width*C) 2D views so stores are
    unmasked full-width vst.
    """
    # TODO(synk): fully fuse both passes into one kernel to avoid materializing the
    # six strided-slice copies feeding the max-of-3 kernel (low absolute cost here).
    B, H, W, C = x.shape
    Ho = (H - 1) // 2 + 1
    Wo = (W - 1) // 2 + 1
    pad_val = float(jnp.finfo(x.dtype).min)
    xp = jnp.pad(x, ((0, 0), (1, 1), (1, 1), (0, 0)), constant_values=pad_val)
    Wp = W + 2
    # Row pooling: rm[b, ho, w, c] = max_d xp[b, 2*ho + d, w, c]
    rs = [xp[:, d:d + 2 * (Ho - 1) + 1:2, :, :].reshape(B * Ho, Wp * C) for d in range(3)]
    rm = _max3(*rs).reshape(B, Ho, Wp, C)
    # Column pooling: out[b, ho, wo, c] = max_d rm[b, ho, 2*wo + d, c]
    cs = [rm[:, :, d:d + 2 * (Wo - 1) + 1:2, :].reshape(B * Ho, Wo * C) for d in range(3)]
    return _max3(*cs).reshape(B, Ho, Wo, C)


# --------------------------------------------------------------------------
# Adaptive average pooling (exact bins, bf16 MXU, f32 accumulation)
# --------------------------------------------------------------------------
def _adapool_kernel(w_ref, winv_ref, x_ref, o_ref):
    sums = jnp.dot(w_ref[...], x_ref[0], preferred_element_type=jnp.float32)
    o_ref[0] = sums * winv_ref[...]


@functools.partial(jax.jit, static_argnames=("out_size",))
def adaptive_avg_pool(x, out_size):
    """Exact AdaptiveAvgPool2d: output bin i covers [floor(i*In/Out), ceil((i+1)*In/Out)).
    Uses a bf16 0/1 indicator matmul, then an exact f32 reciprocal per bin."""
    B, H, W, C = x.shape
    OH, OW = out_size

    def indicator(n_in, n_out):
        m = np.zeros((n_out, n_in), dtype=np.float32)
        for i in range(n_out):
            s = (i * n_in) // n_out
            e = -((-(i + 1) * n_in) // n_out)   # ceil
            m[i, s:e] = 1.0
        return m

    ind2 = np.kron(indicator(H, OH), indicator(W, OW))          # (OH*OW, H*W) of 0/1
    cnt_inv = (1.0 / ind2.sum(axis=1, keepdims=True)).astype(np.float32)
    P, hw = OH * OW, H * W
    w2 = jnp.asarray(ind2, jnp.bfloat16)
    winv = jnp.asarray(cnt_inv, jnp.float32)
    xf = x.reshape(B, hw, C).astype(jnp.bfloat16)

    out = pl.pallas_call(
        _adapool_kernel,
        out_shape=jax.ShapeDtypeStruct((B, P, C), jnp.float32),
        grid=(B,),
        in_specs=[
            pl.BlockSpec((P, hw), lambda b: (0, 0)),
            pl.BlockSpec((P, 1), lambda b: (0, 0)),
            pl.BlockSpec((1, hw, C), lambda b: (b, 0, 0)),
        ],
        out_specs=pl.BlockSpec((1, P, C), lambda b: (b, 0, 0)),
        compiler_params=pltpu.CompilerParams(dimension_semantics=("parallel",)),
    )(w2, winv, xf)
    return out.reshape(B, OH, OW, C)


# --------------------------------------------------------------------------
# ResNet-101 plumbing (plain-JAX glue around the Pallas kernels)
# --------------------------------------------------------------------------
def im2col(x, ksize, stride, pad):
    """NHWC im2col; returns (B*Ho*Wo, ksize*ksize*C) patches with (kh, kw, C) ordering."""
    # Only used for the 7x7 conv1 and the three strided 3x3 convs; stride-1 3x3 convs
    # go through the implicit-GEMM kernel (conv3x3_s1).
    B, H, W, C = x.shape
    if ksize == 1 and pad == 0:
        xs = x if stride == 1 else x[:, ::stride, ::stride, :]
        _, Ho, Wo, _ = xs.shape
        return xs.reshape(B * Ho * Wo, C), (B, Ho, Wo)
    Ho = (H + 2 * pad - ksize) // stride + 1
    Wo = (W + 2 * pad - ksize) // stride + 1
    xp = jnp.pad(x, ((0, 0), (pad, pad), (pad, pad), (0, 0)))
    cols = []
    for di in range(ksize):
        for dj in range(ksize):
            cols.append(xp[:, di:di + stride * (Ho - 1) + 1:stride,
                           dj:dj + stride * (Wo - 1) + 1:stride, :])
    # Lane-dense concatenation along channels keeps (kh, kw, C) ordering.
    patches = jnp.concatenate(cols, axis=-1)      # (B, Ho, Wo, k*k*C)
    return patches.reshape(B * Ho * Wo, ksize * ksize * C), (B, Ho, Wo)


def fold_bn(bn, eps=1e-5):
    gamma, beta, mean, var = bn
    scale = gamma / jnp.sqrt(var + eps)
    bias = beta - mean * scale
    return scale, bias


@functools.partial(jax.jit, static_argnames=("stride", "pad", "relu"))
def _conv_bn_impl(x, w, bn, residual, *, stride, pad, relu):
    cout, cin, k, _ = w.shape
    scale, bias = fold_bn(bn)
    if k == 3 and stride == 1 and pad == 1 and residual is None:
        return conv3x3_s1(x, w, scale, bias, relu=relu)
    patches, (B, Ho, Wo) = im2col(x.astype(jnp.bfloat16), k, stride, pad)
    wmat = jnp.transpose(w, (2, 3, 1, 0)).reshape(k * k * cin, cout)
    res = None if residual is None else residual.reshape(B * Ho * Wo, cout)
    y = matmul_bn(patches, wmat, scale, bias, residual=res, relu=relu)
    return y.reshape(B, Ho, Wo, cout)


def conv_bn(x, w, bn, stride, pad, relu=True, residual=None):
    """Conv2d(bias=False) + BatchNorm2d (inference) [+ residual add] [+ ReLU]."""
    return _conv_bn_impl(x, w, bn, residual, stride=stride, pad=pad, relu=relu)


def bottleneck(x, p, stride):
    identity = x
    out = conv_bn(x, p["w1"], p["bn1"], stride=1, pad=0, relu=True)
    out = conv_bn(out, p["w2"], p["bn2"], stride=stride, pad=1, relu=True)
    if "wd" in p:
        identity = conv_bn(x, p["wd"], p["bnd"], stride=stride, pad=0, relu=False)
    # conv3 + bn3 + residual add + final ReLU fused in one Pallas kernel call
    out = conv_bn(out, p["w3"], p["bn3"], stride=1, pad=0, relu=True, residual=identity)
    return out


class KeyGen:
    def __init__(self, seed):
        self._key = jax.random.PRNGKey(seed)
        self._i = 0

    def __call__(self):
        k = jax.random.fold_in(self._key, self._i)
        self._i += 1
        return k


def init_conv(key, cout, cin, k):
    fan_in = cin * k * k
    return jax.random.normal(key, (cout, cin, k, k), jnp.float32) / math.sqrt(fan_in)


def init_bn(key, c):
    k1, k2, k3, k4 = jax.random.split(key, 4)
    gamma = 1.0 + 0.1 * jax.random.normal(k1, (c,), jnp.float32)
    beta = 0.1 * jax.random.normal(k2, (c,), jnp.float32)
    mean = 0.1 * jax.random.normal(k3, (c,), jnp.float32)
    var = jax.random.uniform(k4, (c,), jnp.float32, 0.5, 1.5)
    return (gamma, beta, mean, var)


def init_bottleneck(kg, inplanes, planes, downsample):
    p = {
        "w1": init_conv(kg(), planes, inplanes, 1),
        "bn1": init_bn(kg(), planes),
        "w2": init_conv(kg(), planes, planes, 3),
        "bn2": init_bn(kg(), planes),
        "w3": init_conv(kg(), 4 * planes, planes, 1),
        "bn3": init_bn(kg(), 4 * planes),
    }
    if downsample:
        p["wd"] = init_conv(kg(), 4 * planes, inplanes, 1)
        p["bnd"] = init_bn(kg(), 4 * planes)
    return p


def init_resnet101_params(seed=0):
    """Deterministic stand-in for torchvision.resnet101 weights (identical shapes)."""
    # TODO(synk): pretrained torchvision checkpoints cannot be loaded in-script.
    kg = KeyGen(seed)
    params = {"conv1_w": init_conv(kg(), 64, 3, 7), "bn1": init_bn(kg(), 64)}
    layers = []
    inplanes = 64
    for planes, nblocks in [(64, 3), (128, 4), (256, 23), (512, 3)]:
        blocks = []
        for bi in range(nblocks):
            blocks.append(init_bottleneck(
                kg, inplanes if bi == 0 else 4 * planes, planes, downsample=(bi == 0)))
        layers.append(blocks)
        inplanes = 4 * planes
    params["layers"] = layers
    return params


def image_encoder_forward(images_nchw, params, encoded_img_size=14):
    """Matches ImageEncoder.forward: resnet101[:-2] -> AdaptiveAvgPool2d((14,14))
    -> permute(0, 2, 3, 1).  Returns (B, 14, 14, 2048) float32."""
    # TODO(synk): BatchNorm is evaluated in inference mode (folded running stats);
    # PyTorch train-mode batch statistics are not reproduced.
    x = jnp.transpose(images_nchw, (0, 2, 3, 1))  # NCHW -> NHWC
    x = conv_bn(x, params["conv1_w"], params["bn1"], stride=2, pad=3, relu=True)
    x = max_pool_3x3_s2_p1(x)
    for li, layer in enumerate(params["layers"]):
        for bi, blk in enumerate(layer):
            stride = 2 if (li > 0 and bi == 0) else 1
            x = bottleneck(x, blk, stride)
    x = adaptive_avg_pool(x, out_size=(encoded_img_size, encoded_img_size))
    # out.permute(0, 2, 3, 1): output is already NHWC, so nothing left to do.
    return x


if __name__ == "__main__":
    B, H, W = 2, 64, 64  # small image; resnet101 downsamples 32x -> 2x2 feature map
    images = jax.random.normal(jax.random.PRNGKey(0), (B, 3, H, W), jnp.float32)  # NCHW
    params = init_resnet101_params(seed=0)
    out = image_encoder_forward(images, params, encoded_img_size=14)
    out = jax.block_until_ready(out)
    assert out.shape == (B, 14, 14, 2048), out.shape
    assert bool(jnp.all(jnp.isfinite(out)))
    print("KERNEL_OK")
</pallas_src>

<mosaic_0001>
module attributes {stable_mosaic.version = 11 : i64} {
  func.func @_mm_bn_res_kernel(%arg0: i32, %arg1: memref<1024x147xbf16, #tpu.memory_space<vmem>>, %arg2: memref<147x64xbf16, #tpu.memory_space<vmem>>, %arg3: memref<1x64xf32, #tpu.memory_space<vmem>>, %arg4: memref<1x64xf32, #tpu.memory_space<vmem>>, %arg5: memref<1024x64xbf16, #tpu.memory_space<vmem>>) attributes {dimension_semantics = [#tpu.dimension_semantics<parallel>], iteration_bounds = array<i64: 2>, scalar_prefetch = 0 : i64, scratch_operands = 0 : i64, tpu.core_type = #tpu.core_type<tc>, window_params = [{transform_indices = @transform_0, window_bounds = array<i64: 1024, 147>}, {pipeline_mode = #tpu.pipeline_mode<synchronous>, transform_indices = @transform_1, window_bounds = array<i64: 147, 64>}, {pipeline_mode = #tpu.pipeline_mode<synchronous>, transform_indices = @transform_2, window_bounds = array<i64: 1, 64>}, {pipeline_mode = #tpu.pipeline_mode<synchronous>, transform_indices = @transform_3, window_bounds = array<i64: 1, 64>}, {transform_indices = @transform_4, window_bounds = array<i64: 1024, 64>}]} {
    %c0 = arith.constant 0 : index
    %c0_0 = arith.constant 0 : index
    %0 = vector.load %arg1[%c0, %c0_0] : memref<1024x147xbf16, #tpu.memory_space<vmem>>, vector<1024x147xbf16>
    %c0_1 = arith.constant 0 : index
    %c0_2 = arith.constant 0 : index
    %1 = vector.load %arg2[%c0_1, %c0_2] : memref<147x64xbf16, #tpu.memory_space<vmem>>, vector<147x64xbf16>
    %cst = arith.constant dense<0.000000e+00> : vector<1024x64xf32>
    %2 = tpu.matmul %0, %1, %cst {dimension_numbers = #tpu.dot_dimension_numbers<[1], [0], [0], [1], [0, 0, 1, 1], [], []>} : vector<1024x147xbf16>, vector<147x64xbf16>, vector<1024x64xf32> -> vector<1024x64xf32>
    %c0_3 = arith.constant 0 : index
    %c0_4 = arith.constant 0 : index
    %3 = vector.load %arg3[%c0_3, %c0_4] : memref<1x64xf32, #tpu.memory_space<vmem>>, vector<1x64xf32>
    %4 = vector.broadcast %3 : vector<1x64xf32> to vector<1024x64xf32>
    %5 = arith.mulf %2, %4 : vector<1024x64xf32>
    %c0_5 = arith.constant 0 : index
    %c0_6 = arith.constant 0 : index
    %6 = vector.load %arg4[%c0_5, %c0_6] : memref<1x64xf32, #tpu.memory_space<vmem>>, vector<1x64xf32>
    %7 = vector.broadcast %6 : vector<1x64xf32> to vector<1024x64xf32>
    %8 = arith.addf %5, %7 : vector<1024x64xf32>
    %cst_7 = arith.constant 0.000000e+00 : f32
    %9 = vector.broadcast %cst_7 : f32 to vector<1024x64xf32>
    %10 = arith.maximumf %8, %9 : vector<1024x64xf32>
    %11 = arith.truncf %10 : vector<1024x64xf32> to vector<1024x64xbf16>
    %c0_8 = arith.constant 0 : index
    %c0_9 = arith.constant 0 : index
    %12 = vector.load %arg5[%c0_8, %c0_9] : memref<1024x64xbf16, #tpu.memory_space<vmem>>, vector<1024x64xbf16>
    tpu.vector_store %arg5[%c0_8, %c0_9], %11 {strides = array<i32>} : memref<1024x64xbf16, #tpu.memory_space<vmem>>, vector<1024x64xbf16>,
    return
  }
  func.func @transform_0(%arg0: i32) -> (i32, i32) {
    %c0_i32 = arith.constant 0 : i32
    %c0_i32_0 = arith.constant 0 : i32
    return %arg0, %c0_i32 : i32, i32
  }
  func.func @transform_1(%arg0: i32) -> (i32, i32) {
    %c0_i32 = arith.constant 0 : i32
    %c0_i32_0 = arith.constant 0 : i32
    %c0_i32_1 = arith.constant 0 : i32
    return %c0_i32, %c0_i32_0 : i32, i32
  }
  func.func @transform_2(%arg0: i32) -> (i32, i32) {
    %c0_i32 = arith.constant 0 : i32
    %c0_i32_0 = arith.constant 0 : i32
    %c0_i32_1 = arith.constant 0 : i32
    return %c0_i32, %c0_i32_0 : i32, i32
  }
  func.func @transform_3(%arg0: i32) -> (i32, i32) {
    %c0_i32 = arith.constant 0 : i32
    %c0_i32_0 = arith.constant 0 : i32
    %c0_i32_1 = arith.constant 0 : i32
    return %c0_i32, %c0_i32_0 : i32, i32
  }
  func.func @transform_4(%arg0: i32) -> (i32, i32) {
    %c0_i32 = arith.constant 0 : i32
    %c0_i32_0 = arith.constant 0 : i32
    return %arg0, %c0_i32 : i32, i32
  }
}

</mosaic_0001>

<llo_original>
// kernel: _conv_bn_impl.1
$region0: #{_conv_bn_impl.1}
  #allocation0 [shape = 'u32[]', space=smem, size = 0x4, offset = 0x4, fixed_abs, tag = 'smem constant byte address 0x4 - core index']
  #allocation1 [shape = 'u32[72,128]{1,0:T(1,128)}', space=vmem, size = 0x9000, scoped, tag = 'internal scratch']
  %s0 = inlined_call_operand.vmem [shape: bf16[2048,147], index: 0, kind: input, shape index: {}]
  %s1 = inlined_call_operand.vmem [shape: bf16[147,64], index: 1, kind: input, shape index: {}]
  %s2 = inlined_call_operand.vmem [shape: f32[1,64], index: 2, kind: input, shape index: {}]
  %s3 = inlined_call_operand.vmem [shape: f32[1,64], index: 3, kind: input, shape index: {}]
  %s4 = inlined_call_operand.hbm [shape: bf16[2048,64], index: 4, kind: output, shape index: {}]
  %s5 = sld [smem:[#allocation0]]
  $region49: #{_conv_bn_impl.1} parent=0
    _
  %s7 = ssub.s32 1, %s5
  %s8 = scalar_select 0, %s7, %s5
  $region1: #{_conv_bn_impl.1} parent=0
    #allocation2 [shape = 'u8[524288]{0}', space=vmem, size = 0x80000, scoped, tag = 'output window, operand 0']
    #allocation3 [shape = 's32[2]{0}', space=sflag, size = 0x8, scoped, tag = 'scoped memory for _conv_bn_impl.1']
    %9 = vsyncpa [#allocation3], 0
    %s10 = scalar_lea.sflag [#allocation3], 1
    %11 = vsyncpa %s10, 0
    loop: start=0, step=1, limit=4
    $region2: #{_conv_bn_impl.1} parent=1 // loop_pre_header
      _
    $region3: #{_conv_bn_impl.1} parent=1 // loop_header
      %s13 = sphi 0, %s17
      %p14 = scmp.ge.s32.totalorder %s13, 4
      %s23 = sphi 0, %s25
      %s26 = sphi 0, %s23
      %s27 = sphi 0, %s26
      %s43 = sphi 0, %s27
      %s47 = sphi 0, %s47
      %s49 = sphi 0, %s47
      %s50 = sphi 0, %s49
      %s64 = sphi 0, %s50
      %s68 = sphi 0, %s68
      %s70 = sphi 0, %s68
      %s71 = sphi 0, %s70
      %s85 = sphi 0, %s71
      %s89 = sphi 0, %s89
      %s91 = sphi 0, %s89
      %s92 = sphi 0, %s91
      %s106 = sphi 0, %s92
      %s112 = sphi 0, %s114
      %s115 = sphi 0, %s112
      %s116 = sphi 0, %s115
      %s132 = sphi 0, %s116
    $region4: #{_conv_bn_impl.1} parent=1 // loop_header_branch
      %16 = sbr.rel (%p14) target = $region8
    $region5: #{_conv_bn_impl.1} parent=1 // loop_body
      %s18 = ssub.s32 %s13, 1
      %s19 = ssub.s32 %s13, 2
      %s20 = sadd.s32 %s13, 1
      %s21 = ssub.s32 %s13, %s20
      %p22 = scmp.eq.s32.totalorder %s21, 0
      %s24 = sadd.s32 %s23, 1
      %s25 = scalar_select %p22, %s23, %s24
      %p28 = pneg %p22
      %p29 = scmp.eq.s32.totalorder %s13, 1
      %p30 = por %p28, %p29
      %p31 = scmp.ne.s32.totalorder %s23, %s26
      %p32 = scmp.eq.s32.totalorder %s13, 0
      %p33 = por %p31, %p32
      %p34 = scmp.ne.s32.totalorder %s23, %s26
      %p35 = scmp.eq.s32.totalorder %s18, 1
      %p36 = por %p34, %p35
      %p37 = scmp.ne.s32.totalorder %s26, %s27
      %p38 = scmp.eq.s32.totalorder %s18, 0
      %p39 = por %p37, %p38
      %p40 = scmp.ne.s32.totalorder %s26, %s27
      %p41 = scmp.eq.s32.totalorder %s19, 1
      %p42 = por %p40, %p41
      %p44 = scmp.ne.s32.totalorder %s27, %s43
      %p45 = scmp.eq.s32.totalorder %s19, 0
      %p46 = por %p44, %p45
      %s48 = sadd.s32 %s47, 1
      %p51 = scmp.eq.s32.totalorder %s13, 1
      %p52 = scmp.ne.s32.totalorder %s47, %s49
      %p53 = scmp.eq.s32.totalorder %s13, 0
      %p54 = por %p52, %p53
      %p55 = scmp.ne.s32.totalorder %s47, %s49
      %p56 = scmp.eq.s32.totalorder %s18, 1
      %p57 = por %p55, %p56
      %p58 = scmp.ne.s32.totalorder %s49, %s50
      %p59 = scmp.eq.s32.totalorder %s18, 0
      %p60 = por %p58, %p59
      %p61 = scmp.ne.s32.totalorder %s49, %s50
      %p62 = scmp.eq.s32.totalorder %s19, 1
      %p63 = por %p61, %p62
      %p65 = scmp.ne.s32.totalorder %s50, %s64
      %p66 = scmp.eq.s32.totalorder %s19, 0
      %p67 = por %p65, %p66
      %s69 = sadd.s32 %s68, 1
      %p72 = scmp.eq.s32.totalorder %s13, 1
      %p73 = scmp.ne.s32.totalorder %s68, %s70
      %p74 = scmp.eq.s32.totalorder %s13, 0
      %p75 = por %p73, %p74
      %p76 = scmp.ne.s32.totalorder %s68, %s70
      %p77 = scmp.eq.s32.totalorder %s18, 1
      %p78 = por %p76, %p77
      %p79 = scmp.ne.s32.totalorder %s70, %s71
      %p80 = scmp.eq.s32.totalorder %s18, 0
      %p81 = por %p79, %p80
      %p82 = scmp.ne.s32.totalorder %s70, %s71
      %p83 = scmp.eq.s32.totalorder %s19, 1
      %p84 = por %p82, %p83
      %p86 = scmp.ne.s32.totalorder %s71, %s85
      %p87 = scmp.eq.s32.totalorder %s19, 0
      %p88 = por %p86, %p87
      %s90 = sadd.s32 %s89, 1
      %p93 = scmp.eq.s32.totalorder %s13, 1
      %p94 = scmp.ne.s32.totalorder %s89, %s91
      %p95 = scmp.eq.s32.totalorder %s13, 0
      %p96 = por %p94, %p95
      %p97 = scmp.ne.s32.totalorder %s89, %s91
      %p98 = scmp.eq.s32.totalorder %s18, 1
      %p99 = por %p97, %p98
      %p100 = scmp.ne.s32.totalorder %s91, %s92
      %p101 = scmp.eq.s32.totalorder %s18, 0
      %p102 = por %p100, %p101
      %p103 = scmp.ne.s32.totalorder %s91, %s92
      %p104 = scmp.eq.s32.totalorder %s19, 1
      %p105 = por %p103, %p104
      %p107 = scmp.ne.s32.totalorder %s92, %s106
      %p108 = scmp.eq.s32.totalorder %s19, 0
      %p109 = por %p107, %p108
      %s110 = ssub.s32 %s13, %s20
      %p111 = scmp.eq.s32.totalorder %s110, 0
      %s113 = sadd.s32 %s112, 1
      %s114 = scalar_select %p111, %s112, %s113
      %p117 = pneg %p111
      %p118 = scmp.eq.s32.totalorder %s13, 1
      %p119 = por %p117, %p118
      %p120 = scmp.ne.s32.totalorder %s112, %s115
      %p121 = scmp.eq.s32.totalorder %s13, 0
      %p122 = por %p120, %p121
      %p123 = scmp.ne.s32.totalorder %s112, %s115
      %p124 = scmp.eq.s32.totalorder %s18, 1
      %p125 = por %p123, %p124
      %p126 = scmp.ne.s32.totalorder %s115, %s116
      %p127 = scmp.eq.s32.totalorder %s18, 0
      %p128 = por %p126, %p127
      %p129 = scmp.ne.s32.totalorder %s115, %s116
      %p130 = scmp.eq.s32.totalorder %s19, 1
      %p131 = por %p129, %p130
      %p133 = scmp.ne.s32.totalorder %s116, %s132
      %p134 = scmp.eq.s32.totalorder %s19, 0
      %p135 = por %p133, %p134
      %p136 = scmp.le.s32.totalorder 1, %s13
      %p137 = scmp.lt.s32.totalorder %s13, 3
      %p138 = pnand %p136, %p137
      %p139 = pneg %p138
      // Predicated region
      $region9: #{_conv_bn_impl.1} parent=5 // pred_check
        _
      $region10: #{_conv_bn_impl.1} parent=5 // pred_check_branch
        %141 = sbr.rel (%p138) target = $region12
      $region11: #{_conv_bn_impl.1} parent=5 // pred_region
        %s142 = ssub.s32 %s13, 1
        // Predicated region
        $region13: #{_conv_bn_impl.1} parent=11 // pred_check
          %p143 = pneg %p60
        $region14: #{_conv_bn_impl.1} parent=11 // pred_check_branch
          %145 = sbr.rel (%p143) target = $region16
        $region15: #{_conv_bn_impl.1} parent=11 // pred_region
          _
        $region16: #{_conv_bn_impl.1} parent=11 // pred_fallthru
          _
        // Predicated region
        $region17: #{_conv_bn_impl.1} parent=11 // pred_check
          %p146 = pneg %p81
        $region18: #{_conv_bn_impl.1} parent=11 // pred_check_branch
          %148 = sbr.rel (%p146) target = $region20
        $region19: #{_conv_bn_impl.1} parent=11 // pred_region
          _
        $region20: #{_conv_bn_impl.1} parent=11 // pred_fallthru
          _
        // Predicated region
        $region21: #{_conv_bn_impl.1} parent=11 // pred_check
          %p149 = pneg %p102
        $region22: #{_conv_bn_impl.1} parent=11 // pred_check_branch
          %151 = sbr.rel (%p149) target = $region24
        $region23: #{_conv_bn_impl.1} parent=11 // pred_region
          _
        $region24: #{_conv_bn_impl.1} parent=11 // pred_fallthru
          _
      $region12: #{_conv_bn_impl.1} parent=5 // pred_fallthru
        _
      %p152 = scmp.lt.s32.totalorder %s13, 2
      // Predicated region
      $region25: #{_conv_bn_impl.1} parent=5 // pred_check
        %p153 = pneg %p152
      $region26: #{_conv_bn_impl.1} parent=5 // pred_check_branch
        %155 = sbr.rel (%p153) target = $region28
      $region27: #{_conv_bn_impl.1} parent=5 // pred_region
        // Predicated region
        $region29: #{_conv_bn_impl.1} parent=27 // pred_check
          %p156 = pneg %p33
        $region30: #{_conv_bn_impl.1} parent=27 // pred_check_branch
          %158 = sbr.rel (%p156) target = $region32
        $region31: #{_conv_bn_impl.1} parent=27 // pred_region
          %s159 = smul.u32 128, %s13
          %p160 = scmp.lt.s32.totalorder %s159, 255
          %s161 = scalar_select %p160, %s159, 255
          %s162 = smul.addr %s161, 2
          %s163 = smul.addr %s162, 4
          %s164 = scalar_lea.vmem %s0, %s163
          %s165 = smul.u32 128, %s13
        $region32: #{_conv_bn_impl.1} parent=27 // pred_fallthru
          _
      $region28: #{_conv_bn_impl.1} parent=5 // pred_fallthru
        _
      %p166 = scmp.le.s32.totalorder 1, %s13
      %p167 = scmp.lt.s32.totalorder %s13, 3
      %p168 = pnand %p166, %p167
      %p169 = pneg %p168
      // Predicated region
      $region33: #{_conv_bn_impl.1} parent=5 // pred_check
        _
      $region34: #{_conv_bn_impl.1} parent=5 // pred_check_branch
        %171 = sbr.rel (%p168) target = $region36
      $region35: #{_conv_bn_impl.1} parent=5 // pred_region
        %s172 = ssub.s32 %s13, 1
        %s173 = smul.u32 128, %s18
        %p174 = scmp.lt.s32.totalorder %s173, 255
        %s175 = scalar_select %p174, %s173, 255
        %s176 = smul.addr %s175, 2
        %s177 = smul.addr %s176, 4
        %s178 = scalar_lea.vmem %s0, %s177
        %p179 = pneg %p39
        %p180 = pneg %p36
        %p181 = pneg %p60
        %p182 = pneg %p57
        %p183 = pneg %p81
        %p184 = pneg %p78
        %p185 = pneg %p102
        %p186 = pneg %p99
        %p187 = pneg %p128
        %p188 = pneg %p125
        %s189 = sand.u32 %s115, 1
        %s190 = scalar_lea.sflag [#allocation3], %s189
        %s191 = sand.u32 %s115, 1
        %s192 = smul.addr %s191, 512
        %s193 = scalar_lea.vmem [#allocation2], %s192
        %s194 = smul.u32 128, %s18
        %p195 = scmp.lt.s32.totalorder %s194, 255
        %s196 = scalar_select %p195, %s194, 255
        %s197 = smul.addr %s196, 2
        %s198 = smul.addr %s197, 4
        %s199 = scalar_lea.vmem %s0, %s198
        %s200 = smul.u32 128, %s18
        %s201 = smul.u32 128, %s18
        %v203 = vld [vmem:[%s199] sm:$0xff]
        %v204 = vld [vmem:[%s199 + $0x8] sm:$0xff]
        %v205 = vld [vmem:[%s199 + $0x10] sm:$0xff]
        %v206 = vld [vmem:[%s199 + $0x18] sm:$0xff]
        %v207 = vld [vmem:[%s199 + $0x20] sm:$0xff]
        %v208 = vld [vmem:[%s199 + $0x28] sm:$0xff]
        %v209 = vld [vmem:[%s199 + $0x30] sm:$0xff]
        %v210 = vld [vmem:[%s199 + $0x38] sm:$0xff]
        %v211 = vld [vmem:[%s199 + $0x40] sm:$0xff]
        %v212 = vld [vmem:[%s199 + $0x48] sm:$0xff]
        %v213 = vld [vmem:[%s199 + $0x50] sm:$0xff]
        %v214 = vld [vmem:[%s199 + $0x58] sm:$0xff]
        %v215 = vld [vmem:[%s199 + $0x60] sm:$0xff]
        %v216 = vld [vmem:[%s199 + $0x68] sm:$0xff]
        %v217 = vld [vmem:[%s199 + $0x70] sm:$0xff]
        %v218 = vld [vmem:[%s199 + $0x78] sm:$0xff]
        %v219 = vld [vmem:[%s199 + $0x80] sm:$0xff]
        %v220 = vld [vmem:[%s199 + $0x88] sm:$0xff]
        %v221 = vld [vmem:[%s199 + $0x90] sm:$0xff]
        %v222 = vld [vmem:[%s199 + $0x98] sm:$0xff]
        %v223 = vld [vmem:[%s199 + $0xa0] sm:$0xff]
        %v224 = vld [vmem:[%s199 + $0xa8] sm:$0xff]
        %v225 = vld [vmem:[%s199 + $0xb0] sm:$0xff]
        %v226 = vld [vmem:[%s199 + $0xb8] sm:$0xff]
        %v227 = vld [vmem:[%s199 + $0xc0] sm:$0xff]
        %v228 = vld [vmem:[%s199 + $0xc8] sm:$0xff]
        %v229 = vld [vmem:[%s199 + $0xd0] sm:$0xff]
        %v230 = vld [vmem:[%s199 + $0xd8] sm:$0xff]
        %v231 = vld [vmem:[%s199 + $0xe0] sm:$0xff]
        %v232 = vld [vmem:[%s199 + $0xe8] sm:$0xff]
        %v233 = vld [vmem:[%s199 + $0xf0] sm:$0xff]
        %v234 = vld [vmem:[%s199 + $0xf8] sm:$0xff]
        %v235 = vld [vmem:[%s199 + $0x100] sm:$0xff]
        %v236 = vld [vmem:[%s199 + $0x108] sm:$0xff]
        %v237 = vld [vmem:[%s199 + $0x110] sm:$0xff]
        %v238 = vld [vmem:[%s199 + $0x118] sm:$0xff]
        %v239 = vld [vmem:[%s199 + $0x120] sm:$0xff]
        %v240 = vld [vmem:[%s199 + $0x128] sm:$0xff]
        %v241 = vld [vmem:[%s199 + $0x130] sm:$0xff]
        %v242 = vld [vmem:[%s199 + $0x138] sm:$0xff]
        %v243 = vld [vmem:[%s199 + $0x140] sm:$0xff]
        %v244 = vld [vmem:[%s199 + $0x148] sm:$0xff]
        %v245 = vld [vmem:[%s199 + $0x150] sm:$0xff]
        %v246 = vld [vmem:[%s199 + $0x158] sm:$0xff]
        %v247 = vld [vmem:[%s199 + $0x160] sm:$0xff]
        %v248 = vld [vmem:[%s199 + $0x168] sm:$0xff]
        %v249 = vld [vmem:[%s199 + $0x170] sm:$0xff]
        %v250 = vld [vmem:[%s199 + $0x178] sm:$0xff]
        %v251 = vld [vmem:[%s199 + $0x180] sm:$0xff]
        %v252 = vld [vmem:[%s199 + $0x188] sm:$0xff]
        %v253 = vld [vmem:[%s199 + $0x190] sm:$0xff]
        %v254 = vld [vmem:[%s199 + $0x198] sm:$0xff]
        %v255 = vld [vmem:[%s199 + $0x1a0] sm:$0xff]
        %v256 = vld [vmem:[%s199 + $0x1a8] sm:$0xff]
        %v257 = vld [vmem:[%s199 + $0x1b0] sm:$0xff]
        %v258 = vld [vmem:[%s199 + $0x1b8] sm:$0xff]
        %v259 = vld [vmem:[%s199 + $0x1c0] sm:$0xff]
        %v260 = vld [vmem:[%s199 + $0x1c8] sm:$0xff]
        %v261 = vld [vmem:[%s199 + $0x1d0] sm:$0xff]
        %v262 = vld [vmem:[%s199 + $0x1d8] sm:$0xff]
        %v263 = vld [vmem:[%s199 + $0x1e0] sm:$0xff]
        %v264 = vld [vmem:[%s199 + $0x1e8] sm:$0xff]
        %v265 = vld [vmem:[%s199 + $0x1f0] sm:$0xff]
        %v266 = vld [vmem:[%s199 + $0x1f8] sm:$0xff]
        %v267 = vld [vmem:[%s199 + $0x200] sm:$0xff]
        %v268 = vld [vmem:[%s199 + $0x208] sm:$0xff]
        %v269 = vld [vmem:[%s199 + $0x210] sm:$0xff]
        %v270 = vld [vmem:[%s199 + $0x218] sm:$0xff]
        %v271 = vld [vmem:[%s199 + $0x220] sm:$0xff]
        %v272 = vld [vmem:[%s199 + $0x228] sm:$0xff]
        %v273 = vld [vmem:[%s199 + $0x230] sm:$0xff]
        %v274 = vld [vmem:[%s199 + $0x238] sm:$0xff]
        %v275 = vld [vmem:[%s199 + $0x240] sm:$0xff]
        %v276 = vld [vmem:[%s199 + $0x248] sm:$0xff]
        %v277 = vld [vmem:[%s199 + $0x250] sm:$0xff]
        %v278 = vld [vmem:[%s199 + $0x258] sm:$0xff]
        %v279 = vld [vmem:[%s199 + $0x260] sm:$0xff]
        %v280 = vld [vmem:[%s199 + $0x268] sm:$0xff]
        %v281 = vld [vmem:[%s199 + $0x270] sm:$0xff]
        %v282 = vld [vmem:[%s199 + $0x278] sm:$0xff]
        %v283 = vld [vmem:[%s199 + $0x280] sm:$0xff]
        %v284 = vld [vmem:[%s199 + $0x288] sm:$0xff]
        %v285 = vld [vmem:[%s199 + $0x290] sm:$0xff]
        %v286 = vld [vmem:[%s199 + $0x298] sm:$0xff]
        %v287 = vld [vmem:[%s199 + $0x2a0] sm:$0xff]
        %v288 = vld [vmem:[%s199 + $0x2a8] sm:$0xff]
        %v289 = vld [vmem:[%s199 + $0x2b0] sm:$0xff]
        %v290 = vld [vmem:[%s199 + $0x2b8] sm:$0xff]
        %v291 = vld [vmem:[%s199 + $0x2c0] sm:$0xff]
        %v292 = vld [vmem:[%s199 + $0x2c8] sm:$0xff]
        %v293 = vld [vmem:[%s199 + $0x2d0] sm:$0xff]
        %v294 = vld [vmem:[%s199 + $0x2d8] sm:$0xff]
        %v295 = vld [vmem:[%s199 + $0x2e0] sm:$0xff]
        %v296 = vld [vmem:[%s199 + $0x2e8] sm:$0xff]
        %v297 = vld [vmem:[%s199 + $0x2f0] sm:$0xff]
        %v298 = vld [vmem:[%s199 + $0x2f8] sm:$0xff]
        %v299 = vld [vmem:[%s199 + $0x300] sm:$0xff]
        %v300 = vld [vmem:[%s199 + $0x308] sm:$0xff]
        %v301 = vld [vmem:[%s199 + $0x310] sm:$0xff]
        %v302 = vld [vmem:[%s199 + $0x318] sm:$0xff]
        %v303 = vld [vmem:[%s199 + $0x320] sm:$0xff]
        %v304 = vld [vmem:[%s199 + $0x328] sm:$0xff]
        %v305 = vld [vmem:[%s199 + $0x330] sm:$0xff]
        %v306 = vld [vmem:[%s199 + $0x338] sm:$0xff]
        %v307 = vld [vmem:[%s199 + $0x340] sm:$0xff]
        %v308 = vld [vmem:[%s199 + $0x348] sm:$0xff]
        %v309 = vld [vmem:[%s199 + $0x350] sm:$0xff]
        %v310 = vld [vmem:[%s199 + $0x358] sm:$0xff]
        %v311 = vld [vmem:[%s199 + $0x360] sm:$0xff]
        %v312 = vld [vmem:[%s199 + $0x368] sm:$0xff]
        %v313 = vld [vmem:[%s199 + $0x370] sm:$0xff]
        %v314 = vld [vmem:[%s199 + $0x378] sm:$0xff]
        %v315 = vld [vmem:[%s199 + $0x380] sm:$0xff]
        %v316 = vld [vmem:[%s199 + $0x388] sm:$0xff]
        %v317 = vld [vmem:[%s199 + $0x390] sm:$0xff]
        %v318 = vld [vmem:[%s199 + $0x398] sm:$0xff]
        %v319 = vld [vmem:[%s199 + $0x3a0] sm:$0xff]
        %v320 = vld [vmem:[%s199 + $0x3a8] sm:$0xff]
        %v321 = vld [vmem:[%s199 + $0x3b0] sm:$0xff]
        %v322 = vld [vmem:[%s199 + $0x3b8] sm:$0xff]
        %v323 = vld [vmem:[%s199 + $0x3c0] sm:$0xff]
        %v324 = vld [vmem:[%s199 + $0x3c8] sm:$0xff]
        %v325 = vld [vmem:[%s199 + $0x3d0] sm:$0xff]
        %v326 = vld [vmem:[%s199 + $0x3d8] sm:$0xff]
        %v327 = vld [vmem:[%s199 + $0x3e0] sm:$0xff]
        %v328 = vld [vmem:[%s199 + $0x3e8] sm:$0xff]
        %v329 = vld [vmem:[%s199 + $0x3f0] sm:$0xff]
        %v330 = vld [vmem:[%s199 + $0x3f8] sm:$0xff]
        %v331 = vld [vmem:[%s1] sm:$0xf]
        %v332 = vld [vmem:[%s1 + $0x4] sm:$0xf]
        %v333 = vld [vmem:[%s1 + $0x8] sm:$0xf]
        %v334 = vld [vmem:[%s1 + $0xc] sm:$0xf]
        %v335 = vld [vmem:[%s1 + $0x10] sm:$0xf]
        %v336 = vld [vmem:[%s1 + $0x14] sm:$0xf]
        %v337 = vld [vmem:[%s1 + $0x18] sm:$0xf]
        %v338 = vld [vmem:[%s1 + $0x1c] sm:$0xf]
        %v339 = vld [vmem:[%s1 + $0x20] sm:$0xf]
        %v340 = vld [vmem:[%s1 + $0x24] sm:$0xf]
        %v341 = vld [vmem:[%s1 + $0x28] sm:$0xf]
        %v342 = vld [vmem:[%s1 + $0x2c] sm:$0xf]
        %v343 = vld [vmem:[%s1 + $0x30] sm:$0xf]
        %v344 = vld [vmem:[%s1 + $0x34] sm:$0xf]
        %v345 = vld [vmem:[%s1 + $0x38] sm:$0xf]
        %v346 = vld [vmem:[%s1 + $0x3c] sm:$0xf]
        %v347 = vld [vmem:[%s1 + $0x40] sm:$0xf]
        %v348 = vld [vmem:[%s1 + $0x44] sm:$0xf]
        %v349 = vld [vmem:[%s1 + $0x48] sm:$0x3]
        %v478 = vunpack.c.l.b16 %v203
        %v479 = vunpack.c.h.b16 %v203
        %v480 = vunpack.c.l.b16 %v204
        %v481 = vunpack.c.h.b16 %v204
        %v482 = vunpack.c.l.b16 %v205
        %v483 = vunpack.c.h.b16 %v205
        %v484 = vunpack.c.l.b16 %v206
        %v485 = vunpack.c.h.b16 %v206
        %v486 = vunpack.c.l.b16 %v207
        %v487 = vunpack.c.h.b16 %v207
        %v488 = vunpack.c.l.b16 %v208
        %v489 = vunpack.c.h.b16 %v208
        %v490 = vunpack.c.l.b16 %v209
        %v491 = vunpack.c.h.b16 %v209
        %v492 = vunpack.c.l.b16 %v210
        %v493 = vunpack.c.h.b16 %v210
        %v494 = vunpack.c.l.b16 %v211
        %v495 = vunpack.c.h.b16 %v211
        %v496 = vunpack.c.l.b16 %v212
        %v497 = vunpack.c.h.b16 %v212
        %v498 = vunpack.c.l.b16 %v213
        %v499 = vunpack.c.h.b16 %v213
        %v500 = vunpack.c.l.b16 %v214
        %v501 = vunpack.c.h.b16 %v214
        %v502 = vunpack.c.l.b16 %v215
        %v503 = vunpack.c.h.b16 %v215
        %v504 = vunpack.c.l.b16 %v216
        %v505 = vunpack.c.h.b16 %v216
        %v506 = vunpack.c.l.b16 %v217
        %v507 = vunpack.c.h.b16 %v217
        %v508 = vunpack.c.l.b16 %v218
        %v509 = vunpack.c.h.b16 %v218
        %v510 = vunpack.c.l.b16 %v219
        %v511 = vunpack.c.h.b16 %v219
        %v512 = vunpack.c.l.b16 %v220
        %v513 = vunpack.c.h.b16 %v220
        %v514 = vunpack.c.l.b16 %v221
        %v515 = vunpack.c.h.b16 %v221
        %v516 = vunpack.c.l.b16 %v222
        %v517 = vunpack.c.h.b16 %v222
        %v518 = vunpack.c.l.b16 %v223
        %v519 = vunpack.c.h.b16 %v223
        %v520 = vunpack.c.l.b16 %v224
        %v521 = vunpack.c.h.b16 %v224
        %v522 = vunpack.c.l.b16 %v225
        %v523 = vunpack.c.h.b16 %v225
        %v524 = vunpack.c.l.b16 %v226
        %v525 = vunpack.c.h.b16 %v226
        %v526 = vunpack.c.l.b16 %v227
        %v527 = vunpack.c.h.b16 %v227
        %v528 = vunpack.c.l.b16 %v228
        %v529 = vunpack.c.h.b16 %v228
        %v530 = vunpack.c.l.b16 %v229
        %v531 = vunpack.c.h.b16 %v229
        %v532 = vunpack.c.l.b16 %v230
        %v533 = vunpack.c.h.b16 %v230
        %v534 = vunpack.c.l.b16 %v231
        %v535 = vunpack.c.h.b16 %v231
        %v536 = vunpack.c.l.b16 %v232
        %v537 = vunpack.c.h.b16 %v232
        %v538 = vunpack.c.l.b16 %v233
        %v539 = vunpack.c.h.b16 %v233
        %v540 = vunpack.c.l.b16 %v234
        %v541 = vunpack.c.h.b16 %v234
        %v542 = vunpack.c.l.b16 %v235
        %v543 = vunpack.c.h.b16 %v235
        %v544 = vunpack.c.l.b16 %v236
        %v545 = vunpack.c.h.b16 %v236
        %v546 = vunpack.c.l.b16 %v237
        %v547 = vunpack.c.h.b16 %v237
        %v548 = vunpack.c.l.b16 %v238
        %v549 = vunpack.c.h.b16 %v238
        %v550 = vunpack.c.l.b16 %v239
        %v551 = vunpack.c.h.b16 %v239
        %v552 = vunpack.c.l.b16 %v240
        %v553 = vunpack.c.h.b16 %v240
        %v554 = vunpack.c.l.b16 %v241
        %v555 = vunpack.c.h.b16 %v241
        %v556 = vunpack.c.l.b16 %v242
        %v557 = vunpack.c.h.b16 %v242
        %v558 = vunpack.c.l.b16 %v243
        %v559 = vunpack.c.h.b16 %v243
        %v560 = vunpack.c.l.b16 %v244
        %v561 = vunpack.c.h.b16 %v244
        %v562 = vunpack.c.l.b16 %v245
        %v563 = vunpack.c.h.b16 %v245
        %v564 = vunpack.c.l.b16 %v246
        %v565 = vunpack.c.h.b16 %v246
        %v566 = vunpack.c.l.b16 %v247
        %v567 = vunpack.c.h.b16 %v247
        %v568 = vunpack.c.l.b16 %v248
        %v569 = vunpack.c.h.b16 %v248
        %v570 = vunpack.c.l.b16 %v249
        %v571 = vunpack.c.h.b16 %v249
        %v572 = vunpack.c.l.b16 %v250
        %v573 = vunpack.c.h.b16 %v250
        %v574 = vunpack.c.l.b16 %v251
        %v575 = vunpack.c.h.b16 %v251
        %v576 = vunpack.c.l.b16 %v252
        %v577 = vunpack.c.h.b16 %v252
        %v578 = vunpack.c.l.b16 %v253
        %v579 = vunpack.c.h.b16 %v253
        %v580 = vunpack.c.l.b16 %v254
        %v581 = vunpack.c.h.b16 %v254
        %v582 = vunpack.c.l.b16 %v255
        %v583 = vunpack.c.h.b16 %v255
        %v584 = vunpack.c.l.b16 %v256
        %v585 = vunpack.c.h.b16 %v256
        %v586 = vunpack.c.l.b16 %v257
        %v587 = vunpack.c.h.b16 %v257
        %v588 = vunpack.c.l.b16 %v258
        %v589 = vunpack.c.h.b16 %v258
        %v590 = vunpack.c.l.b16 %v259
        %v591 = vunpack.c.h.b16 %v259
        %v592 = vunpack.c.l.b16 %v260
        %v593 = vunpack.c.h.b16 %v260
        %v594 = vunpack.c.l.b16 %v261
        %v595 = vunpack.c.h.b16 %v261
        %v596 = vunpack.c.l.b16 %v262
        %v597 = vunpack.c.h.b16 %v262
        %v598 = vunpack.c.l.b16 %v263
        %v599 = vunpack.c.h.b16 %v263
        %v600 = vunpack.c.l.b16 %v264
        %v601 = vunpack.c.h.b16 %v264
        %v602 = vunpack.c.l.b16 %v265
        %v603 = vunpack.c.h.b16 %v265
        %v604 = vunpack.c.l.b16 %v266
        %v605 = vunpack.c.h.b16 %v266
        %v606 = vunpack.c.l.b16 %v267
        %v607 = vunpack.c.h.b16 %v267
        %v608 = vunpack.c.l.b16 %v268
        %v609 = vunpack.c.h.b16 %v268
        %v610 = vunpack.c.l.b16 %v269
        %v611 = vunpack.c.h.b16 %v269
        %v612 = vunpack.c.l.b16 %v270
        %v613 = vunpack.c.h.b16 %v270
        %v614 = vunpack.c.l.b16 %v271
        %v615 = vunpack.c.h.b16 %v271
        %v616 = vunpack.c.l.b16 %v272
        %v617 = vunpack.c.h.b16 %v272
        %v618 = vunpack.c.l.b16 %v273
        %v619 = vunpack.c.h.b16 %v273
        %v620 = vunpack.c.l.b16 %v274
        %v621 = vunpack.c.h.b16 %v274
        %v622 = vunpack.c.l.b16 %v275
        %v623 = vunpack.c.h.b16 %v275
        %v624 = vunpack.c.l.b16 %v276
        %v625 = vunpack.c.h.b16 %v276
        %v626 = vunpack.c.l.b16 %v277
        %v627 = vunpack.c.h.b16 %v277
        %v628 = vunpack.c.l.b16 %v278
        %v629 = vunpack.c.h.b16 %v278
        %v630 = vunpack.c.l.b16 %v279
        %v631 = vunpack.c.h.b16 %v279
        %v632 = vunpack.c.l.b16 %v280
        %v633 = vunpack.c.h.b16 %v280
        %v634 = vunpack.c.l.b16 %v281
        %v635 = vunpack.c.h.b16 %v281
        %v636 = vunpack.c.l.b16 %v282
        %v637 = vunpack.c.h.b16 %v282
        %v638 = vunpack.c.l.b16 %v283
        %v639 = vunpack.c.h.b16 %v283
        %v640 = vunpack.c.l.b16 %v284
        %v641 = vunpack.c.h.b16 %v284
        %v642 = vunpack.c.l.b16 %v285
        %v643 = vunpack.c.h.b16 %v285
        %v644 = vunpack.c.l.b16 %v286
        %v645 = vunpack.c.h.b16 %v286
        %v646 = vunpack.c.l.b16 %v287
        %v647 = vunpack.c.h.b16 %v287
        %v648 = vunpack.c.l.b16 %v288
        %v649 = vunpack.c.h.b16 %v288
        %v650 = vunpack.c.l.b16 %v289
        %v651 = vunpack.c.h.b16 %v289
        %v652 = vunpack.c.l.b16 %v290
        %v653 = vunpack.c.h.b16 %v290
        %v654 = vunpack.c.l.b16 %v291
        %v655 = vunpack.c.h.b16 %v291
        %v656 = vunpack.c.l.b16 %v292
        %v657 = vunpack.c.h.b16 %v292
        %v658 = vunpack.c.l.b16 %v293
        %v659 = vunpack.c.h.b16 %v293
        %v660 = vunpack.c.l.b16 %v294
        %v661 = vunpack.c.h.b16 %v294
        %v662 = vunpack.c.l.b16 %v295
        %v663 = vunpack.c.h.b16 %v295
        %v664 = vunpack.c.l.b16 %v296
        %v665 = vunpack.c.h.b16 %v296
        %v666 = vunpack.c.l.b16 %v297
        %v667 = vunpack.c.h.b16 %v297
        %v668 = vunpack.c.l.b16 %v298
        %v669 = vunpack.c.h.b16 %v298
        %v670 = vunpack.c.l.b16 %v299
        %v671 = vunpack.c.h.b16 %v299
        %v672 = vunpack.c.l.b16 %v300
        %v673 = vunpack.c.h.b16 %v300
        %v674 = vunpack.c.l.b16 %v301
        %v675 = vunpack.c.h.b16 %v301
        %v676 = vunpack.c.l.b16 %v302
        %v677 = vunpack.c.h.b16 %v302
        %v678 = vunpack.c.l.b16 %v303
        %v679 = vunpack.c.h.b16 %v303
        %v680 = vunpack.c.l.b16 %v304
        %v681 = vunpack.c.h.b16 %v304
        %v682 = vunpack.c.l.b16 %v305
        %v683 = vunpack.c.h.b16 %v305
        %v684 = vunpack.c.l.b16 %v306
        %v685 = vunpack.c.h.b16 %v306
        %v686 = vunpack.c.l.b16 %v307
        %v687 = vunpack.c.h.b16 %v307
        %v688 = vunpack.c.l.b16 %v308
        %v689 = vunpack.c.h.b16 %v308
        %v690 = vunpack.c.l.b16 %v309
        %v691 = vunpack.c.h.b16 %v309
        %v692 = vunpack.c.l.b16 %v310
        %v693 = vunpack.c.h.b16 %v310
        %v694 = vunpack.c.l.b16 %v311
        %v695 = vunpack.c.h.b16 %v311
        %v696 = vunpack.c.l.b16 %v312
        %v697 = vunpack.c.h.b16 %v312
        %v698 = vunpack.c.l.b16 %v313
        %v699 = vunpack.c.h.b16 %v313
        %v700 = vunpack.c.l.b16 %v314
        %v701 = vunpack.c.h.b16 %v314
        %v702 = vunpack.c.l.b16 %v315
        %v703 = vunpack.c.h.b16 %v315
        %v704 = vunpack.c.l.b16 %v316
        %v705 = vunpack.c.h.b16 %v316
        %v706 = vunpack.c.l.b16 %v317
        %v707 = vunpack.c.h.b16 %v317
        %v708 = vunpack.c.l.b16 %v318
        %v709 = vunpack.c.h.b16 %v318
        %v710 = vunpack.c.l.b16 %v319
        %v711 = vunpack.c.h.b16 %v319
        %v712 = vunpack.c.l.b16 %v320
        %v713 = vunpack.c.h.b16 %v320
        %v714 = vunpack.c.l.b16 %v321
        %v715 = vunpack.c.h.b16 %v321
        %v716 = vunpack.c.l.b16 %v322
        %v717 = vunpack.c.h.b16 %v322
        %v718 = vunpack.c.l.b16 %v323
        %v719 = vunpack.c.h.b16 %v323
        %v720 = vunpack.c.l.b16 %v324
        %v721 = vunpack.c.h.b16 %v324
        %v722 = vunpack.c.l.b16 %v325
        %v723 = vunpack.c.h.b16 %v325
        %v724 = vunpack.c.l.b16 %v326
        %v725 = vunpack.c.h.b16 %v326
        %v726 = vunpack.c.l.b16 %v327
        %v727 = vunpack.c.h.b16 %v327
        %v728 = vunpack.c.l.b16 %v328
        %v729 = vunpack.c.h.b16 %v328
        %v730 = vunpack.c.l.b16 %v329
        %v731 = vunpack.c.h.b16 %v329
        %v732 = vunpack.c.l.b16 %v330
        %v733 = vunpack.c.h.b16 %v330
        %v734 = vpack.c.b16 %v480, %v478
        %v735 = vpack.c.b16 %v481, %v479
        %v736 = vpack.c.b16 %v484, %v482
        %v737 = vpack.c.b16 %v485, %v483
        %v738 = vpack.c.b16 %v488, %v486
        %v739 = vpack.c.b16 %v489, %v487
        %v740 = vpack.c.b16 %v492, %v490
        %v741 = vpack.c.b16 %v493, %v491
        %v742 = vpack.c.b16 %v496, %v494
        %v743 = vpack.c.b16 %v497, %v495
        %v744 = vpack.c.b16 %v500, %v498
        %v745 = vpack.c.b16 %v501, %v499
        %v746 = vpack.c.b16 %v504, %v502
        %v747 = vpack.c.b16 %v505, %v503
        %v748 = vpack.c.b16 %v508, %v506
        %v749 = vpack.c.b16 %v509, %v507
        %v750 = vpack.c.b16 %v512, %v510
        %v751 = vpack.c.b16 %v513, %v511
        %v752 = vpack.c.b16 %v516, %v514
        %v753 = vpack.c.b16 %v517, %v515
        %v754 = vpack.c.b16 %v520, %v518
        %v755 = vpack.c.b16 %v521, %v519
        %v756 = vpack.c.b16 %v524, %v522
        %v757 = vpack.c.b16 %v525, %v523
        %v758 = vpack.c.b16 %v528, %v526
        %v759 = vpack.c.b16 %v529, %v527
        %v760 = vpack.c.b16 %v532, %v530
        %v761 = vpack.c.b16 %v533, %v531
        %v762 = vpack.c.b16 %v536, %v534
        %v763 = vpack.c.b16 %v537, %v535
        %v764 = vpack.c.b16 %v540, %v538
        %v765 = vpack.c.b16 %v541, %v539
        %v766 = vpack.c.b16 %v544, %v542
        %v767 = vpack.c.b16 %v545, %v543
        %v768 = vpack.c.b16 %v548, %v546
        %v769 = vpack.c.b16 %v549, %v547
        %v770 = vpack.c.b16 %v552, %v550
        %v771 = vpack.c.b16 %v553, %v551
        %v772 = vpack.c.b16 %v556, %v554
        %v773 = vpack.c.b16 %v557, %v555
        %v774 = vpack.c.b16 %v560, %v558
        %v775 = vpack.c.b16 %v561, %v559
        %v776 = vpack.c.b16 %v564, %v562
        %v777 = vpack.c.b16 %v565, %v563
        %v778 = vpack.c.b16 %v568, %v566
        %v779 = vpack.c.b16 %v569, %v567
        %v780 = vpack.c.b16 %v572, %v570
        %v781 = vpack.c.b16 %v573, %v571
        %v782 = vpack.c.b16 %v576, %v574
        %v783 = vpack.c.b16 %v577, %v575
        %v784 = vpack.c.b16 %v580, %v578
        %v785 = vpack.c.b16 %v581, %v579
        %v786 = vpack.c.b16 %v584, %v582
        %v787 = vpack.c.b16 %v585, %v583
        %v788 = vpack.c.b16 %v588, %v586
        %v789 = vpack.c.b16 %v589, %v587
        %v790 = vpack.c.b16 %v592, %v590
        %v791 = vpack.c.b16 %v593, %v591
        %v792 = vpack.c.b16 %v596, %v594
        %v793 = vpack.c.b16 %v597, %v595
        %v794 = vpack.c.b16 %v600, %v598
        %v795 = vpack.c.b16 %v601, %v599
        %v796 = vpack.c.b16 %v604, %v602
        %v797 = vpack.c.b16 %v605, %v603
        %v798 = vpack.c.b16 %v608, %v606
        %v799 = vpack.c.b16 %v609, %v607
        %v800 = vpack.c.b16 %v612, %v610
        %v801 = vpack.c.b16 %v613, %v611
        %v802 = vpack.c.b16 %v616, %v614
        %v803 = vpack.c.b16 %v617, %v615
        %v804 = vpack.c.b16 %v620, %v618
        %v805 = vpack.c.b16 %v621, %v619
        %v806 = vpack.c.b16 %v624, %v622
        %v807 = vpack.c.b16 %v625, %v623
        %v808 = vpack.c.b16 %v628, %v626
        %v809 = vpack.c.b16 %v629, %v627
        %v810 = vpack.c.b16 %v632, %v630
        %v811 = vpack.c.b16 %v633, %v631
        %v812 = vpack.c.b16 %v636, %v634
        %v813 = vpack.c.b16 %v637, %v635
        %v814 = vpack.c.b16 %v640, %v638
        %v815 = vpack.c.b16 %v641, %v639
        %v816 = vpack.c.b16 %v644, %v642
        %v817 = vpack.c.b16 %v645, %v643
        %v818 = vpack.c.b16 %v648, %v646
        %v819 = vpack.c.b16 %v649, %v647
        %v820 = vpack.c.b16 %v652, %v650
        %v821 = vpack.c.b16 %v653, %v651
        %v822 = vpack.c.b16 %v656, %v654
        %v823 = vpack.c.b16 %v657, %v655
        %v824 = vpack.c.b16 %v660, %v658
        %v825 = vpack.c.b16 %v661, %v659
        %v826 = vpack.c.b16 %v664, %v662
        %v827 = vpack.c.b16 %v665, %v663
        %v828 = vpack.c.b16 %v668, %v666
        %v829 = vpack.c.b16 %v669, %v667
        %v830 = vpack.c.b16 %v672, %v670
        %v831 = vpack.c.b16 %v673, %v671
        %v832 = vpack.c.b16 %v676, %v674
        %v833 = vpack.c.b16 %v677, %v675
        %v834 = vpack.c.b16 %v680, %v678
        %v835 = vpack.c.b16 %v681, %v679
        %v836 = vpack.c.b16 %v684, %v682
        %v837 = vpack.c.b16 %v685, %v683
        %v838 = vpack.c.b16 %v688, %v686
        %v839 = vpack.c.b16 %v689, %v687
        %v840 = vpack.c.b16 %v692, %v690
        %v841 = vpack.c.b16 %v693, %v691
        %v842 = vpack.c.b16 %v696, %v694
        %v843 = vpack.c.b16 %v697, %v695
        %v844 = vpack.c.b16 %v700, %v698
        %v845 = vpack.c.b16 %v701, %v699
        %v846 = vpack.c.b16 %v704, %v702
        %v847 = vpack.c.b16 %v705, %v703
        %v848 = vpack.c.b16 %v708, %v706
        %v849 = vpack.c.b16 %v709, %v707
        %v850 = vpack.c.b16 %v712, %v710
        %v851 = vpack.c.b16 %v713, %v711
        %v852 = vpack.c.b16 %v716, %v714
        %v853 = vpack.c.b16 %v717, %v715
        %v854 = vpack.c.b16 %v720, %v718
        %v855 = vpack.c.b16 %v721, %v719
        %v856 = vpack.c.b16 %v724, %v722
        %v857 = vpack.c.b16 %v725, %v723
        %v858 = vpack.c.b16 %v728, %v726
        %v859 = vpack.c.b16 %v729, %v727
        %v860 = vpack.c.b16 %v732, %v730
        %v861 = vpack.c.b16 %v733, %v731
        %v945 = vunpack.c.l.b16 %v331
        %v946 = vunpack.c.l.b16 %v332
        %v947 = vunpack.c.l.b16 %v333
        %v948 = vunpack.c.l.b16 %v334
        %v949 = vunpack.c.l.b16 %v335
        %v950 = vunpack.c.l.b16 %v336
        %v951 = vunpack.c.l.b16 %v337
        %v952 = vunpack.c.l.b16 %v338
        %v953 = vunpack.c.l.b16 %v339
        %v954 = vunpack.c.l.b16 %v340
        %v955 = vunpack.c.l.b16 %v341
        %v956 = vunpack.c.l.b16 %v342
        %v957 = vunpack.c.l.b16 %v343
        %v958 = vunpack.c.l.b16 %v344
        %v959 = vunpack.c.l.b16 %v345
        %v960 = vunpack.c.l.b16 %v346
        %v961 = vunpack.c.l.b16 %v347
        %v962 = vunpack.c.l.b16 %v348
        %v963 = vunpack.c.l.b16 %v349
        %v964 = vpack.c.b16 %v946, %v945
        %v965 = vpack.c.b16 %v948, %v947
        %v966 = vpack.c.b16 %v950, %v949
        %v967 = vpack.c.b16 %v952, %v951
        %v968 = vpack.c.b16 %v954, %v953
        %v969 = vpack.c.b16 %v956, %v955
        %v970 = vpack.c.b16 %v958, %v957
        %v971 = vpack.c.b16 %v960, %v959
        %v972 = vpack.c.b16 %v962, %v961
        %v973 = vpack.c.b16 %v963, %v963
        %vm983 = vcmask 154624
        %v985 = vsel %vm983, %v735, 0
        %v988 = vsel %vm983, %v737, 0
        %v991 = vsel %vm983, %v739, 0
        %v994 = vsel %vm983, %v741, 0
        %v997 = vsel %vm983, %v743, 0
        %v1000 = vsel %vm983, %v745, 0
        %v1003 = vsel %vm983, %v747, 0
        %v1006 = vsel %vm983, %v749, 0
        %v1009 = vsel %vm983, %v751, 0
        %v1012 = vsel %vm983, %v753, 0
        %v1015 = vsel %vm983, %v755, 0
        %v1018 = vsel %vm983, %v757, 0
        %v1021 = vsel %vm983, %v759, 0
        %v1024 = vsel %vm983, %v761, 0
        %v1027 = vsel %vm983, %v763, 0
        %v1030 = vsel %vm983, %v765, 0
        %v1033 = vsel %vm983, %v767, 0
        %v1036 = vsel %vm983, %v769, 0
        %v1039 = vsel %vm983, %v771, 0
        %v1042 = vsel %vm983, %v773, 0
        %v1045 = vsel %vm983, %v775, 0
        %v1048 = vsel %vm983, %v777, 0
        %v1051 = vsel %vm983, %v779, 0
        %v1054 = vsel %vm983, %v781, 0
        %v1057 = vsel %vm983, %v783, 0
        %v1060 = vsel %vm983, %v785, 0
        %v1063 = vsel %vm983, %v787, 0
        %v1066 = vsel %vm983, %v789, 0
        %v1069 = vsel %vm983, %v791, 0
        %v1072 = vsel %vm983, %v793, 0
        %v1075 = vsel %vm983, %v795, 0
        %v1078 = vsel %vm983, %v797, 0
        %v1081 = vsel %vm983, %v799, 0
        %v1084 = vsel %vm983, %v801, 0
        %v1087 = vsel %vm983, %v803, 0
        %v1090 = vsel %vm983, %v805, 0
        %v1093 = vsel %vm983, %v807, 0
        %v1096 = vsel %vm983, %v809, 0
        %v1099 = vsel %vm983, %v811, 0
        %v1102 = vsel %vm983, %v813, 0
        %v1105 = vsel %vm983, %v815, 0
        %v1108 = vsel %vm983, %v817, 0
        %v1111 = vsel %vm983, %v819, 0
        %v1114 = vsel %vm983, %v821, 0
        %v1117 = vsel %vm983, %v823, 0
        %v1120 = vsel %vm983, %v825, 0
        %v1123 = vsel %vm983, %v827, 0
        %v1126 = vsel %vm983, %v829, 0
        %v1129 = vsel %vm983, %v831, 0
        %v1132 = vsel %vm983, %v833, 0
        %v1135 = vsel %vm983, %v835, 0
        %v1138 = vsel %vm983, %v837, 0
        %v1141 = vsel %vm983, %v839, 0
        %v1144 = vsel %vm983, %v841, 0
        %v1147 = vsel %vm983, %v843, 0
        %v1150 = vsel %vm983, %v845, 0
        %v1153 = vsel %vm983, %v847, 0
        %v1156 = vsel %vm983, %v849, 0
        %v1159 = vsel %vm983, %v851, 0
        %v1162 = vsel %vm983, %v853, 0
        %v1165 = vsel %vm983, %v855, 0
        %v1168 = vsel %vm983, %v857, 0
        %v1171 = vsel %vm983, %v859, 0
        %v1174 = vsel %vm983, %v861, 0
        %vm1176 = vcmask 1040384
        %vm1177 = vcmask 1041408
        %v1178 = vsel %vm1176, 4294967295, 65535
        %v1179 = vsel %vm1177, %v1178, 0
        %v1181 = vand.u32 %v973, %v1179
        %1183 = vmatpush.bf16.msra.mxu0 %v971
        %1184 = vmatpush.bf16.msra.mxu0 %v970
        %1185 = vmatpush.bf16.msra.mxu0 %v969
        %1186 = vmatpush.bf16.msra.mxu0 %v968
        %1187 = vmatpush.bf16.msra.mxu0 %v967
        %1188 = vmatpush.bf16.msra.mxu0 %v966
        %1189 = vmatpush.bf16.msra.mxu0 %v965
        %1190 = vmatpush.bf16.msra.mxu0 %v964
        %1191 = vmatmul.bf16.gmra.mxu0 %v734
        %v1192 = vpop.f32.mrf.mxu0
        %v1193 = vadd.f32 0.0, %v1192
        %v1194 = vpop.f32.mrf.mxu0
        %v1195 = vadd.f32 0.0, %v1194
        %1196 = vmatmul.bf16.gmra.mxu0 %v736
        %v1197 = vpop.f32.mrf.mxu0
        %v1198 = vadd.f32 0.0, %v1197
        %v1199 = vpop.f32.mrf.mxu0
        %v1200 = vadd.f32 0.0, %v1199
        %1201 = vmatmul.bf16.gmra.mxu0 %v738
        %v1202 = vpop.f32.mrf.mxu0
        %v1203 = vadd.f32 0.0, %v1202
        %v1204 = vpop.f32.mrf.mxu0
        %v1205 = vadd.f32 0.0, %v1204
        %1206 = vmatmul.bf16.gmra.mxu0 %v740
        %v1207 = vpop.f32.mrf.mxu0
        %v1208 = vadd.f32 0.0, %v1207
        %v1209 = vpop.f32.mrf.mxu0
        %v1210 = vadd.f32 0.0, %v1209
        %1211 = vmatmul.bf16.gmra.mxu0 %v742
        %v1212 = vpop.f32.mrf.mxu0
        %v1213 = vadd.f32 0.0, %v1212
        %v1214 = vpop.f32.mrf.mxu0
        %v1215 = vadd.f32 0.0, %v1214
        %1216 = vmatmul.bf16.gmra.mxu0 %v744
        %v1217 = vpop.f32.mrf.mxu0
        %v1218 = vadd.f32 0.0, %v1217
        %v1219 = vpop.f32.mrf.mxu0
        %v1220 = vadd.f32 0.0, %v1219
        %1221 = vmatmul.bf16.gmra.mxu0 %v746
        %v1222 = vpop.f32.mrf.mxu0
        %v1223 = vadd.f32 0.0, %v1222
        %v1224 = vpop.f32.mrf.mxu0
        %v1225 = vadd.f32 0.0, %v1224
        %1226 = vmatmul.bf16.gmra.mxu0 %v748
        %v1227 = vpop.f32.mrf.mxu0
        %v1228 = vadd.f32 0.0, %v1227
        %v1229 = vpop.f32.mrf.mxu0
        %v1230 = vadd.f32 0.0, %v1229
        %1231 = vmatmul.bf16.gmra.mxu0 %v750
        %v1232 = vpop.f32.mrf.mxu0
        %v1233 = vadd.f32 0.0, %v1232
        %v1234 = vpop.f32.mrf.mxu0
        %v1235 = vadd.f32 0.0, %v1234
        %1236 = vmatmul.bf16.gmra.mxu0 %v752
        %v1237 = vpop.f32.mrf.mxu0
        %v1238 = vadd.f32 0.0, %v1237
        %v1239 = vpop.f32.mrf.mxu0
        %v1240 = vadd.f32 0.0, %v1239
        %1241 = vmatmul.bf16.gmra.mxu0 %v754
        %v1242 = vpop.f32.mrf.mxu0
        %v1243 = vadd.f32 0.0, %v1242
        %v1244 = vpop.f32.mrf.mxu0
        %v1245 = vadd.f32 0.0, %v1244
        %1246 = vmatmul.bf16.gmra.mxu0 %v756
        %v1247 = vpop.f32.mrf.mxu0
        %v1248 = vadd.f32 0.0, %v1247
        %v1249 = vpop.f32.mrf.mxu0
        %v1250 = vadd.f32 0.0, %v1249
        %1251 = vmatmul.bf16.gmra.mxu0 %v758
        %v1252 = vpop.f32.mrf.mxu0
        %v1253 = vadd.f32 0.0, %v1252
        %v1254 = vpop.f32.mrf.mxu0
        %v1255 = vadd.f32 0.0, %v1254
        %1256 = vmatmul.bf16.gmra.mxu0 %v760
        %v1257 = vpop.f32.mrf.mxu0
        %v1258 = vadd.f32 0.0, %v1257
        %v1259 = vpop.f32.mrf.mxu0
        %v1260 = vadd.f32 0.0, %v1259
        %1261 = vmatmul.bf16.gmra.mxu0 %v762
        %v1262 = vpop.f32.mrf.mxu0
        %v1263 = vadd.f32 0.0, %v1262
        %v1264 = vpop.f32.mrf.mxu0
        %v1265 = vadd.f32 0.0, %v1264
        %1266 = vmatmul.bf16.gmra.mxu0 %v764
        %v1267 = vpop.f32.mrf.mxu0
        %v1268 = vadd.f32 0.0, %v1267
        %v1269 = vpop.f32.mrf.mxu0
        %v1270 = vadd.f32 0.0, %v1269
        %1271 = vmatmul.bf16.gmra.mxu0 %v766
        %v1272 = vpop.f32.mrf.mxu0
        %v1273 = vadd.f32 0.0, %v1272
        %v1274 = vpop.f32.mrf.mxu0
        %v1275 = vadd.f32 0.0, %v1274
        %1276 = vmatmul.bf16.gmra.mxu0 %v768
        %v1277 = vpop.f32.mrf.mxu0
        %v1278 = vadd.f32 0.0, %v1277
        %v1279 = vpop.f32.mrf.mxu0
        %v1280 = vadd.f32 0.0, %v1279
        %1281 = vmatmul.bf16.gmra.mxu0 %v770
        %v1282 = vpop.f32.mrf.mxu0
        %v1283 = vadd.f32 0.0, %v1282
        %v1284 = vpop.f32.mrf.mxu0
        %v1285 = vadd.f32 0.0, %v1284
        %1286 = vmatmul.bf16.gmra.mxu0 %v772
        %v1287 = vpop.f32.mrf.mxu0
        %v1288 = vadd.f32 0.0, %v1287
        %v1289 = vpop.f32.mrf.mxu0
        %v1290 = vadd.f32 0.0, %v1289
        %1291 = vmatmul.bf16.gmra.mxu0 %v774
        %v1292 = vpop.f32.mrf.mxu0
        %v1293 = vadd.f32 0.0, %v1292
        %v1294 = vpop.f32.mrf.mxu0
        %v1295 = vadd.f32 0.0, %v1294
        %1296 = vmatmul.bf16.gmra.mxu0 %v776
        %v1297 = vpop.f32.mrf.mxu0
        %v1298 = vadd.f32 0.0, %v1297
        %v1299 = vpop.f32.mrf.mxu0
        %v1300 = vadd.f32 0.0, %v1299
        %1301 = vmatmul.bf16.gmra.mxu0 %v778
        %v1302 = vpop.f32.mrf.mxu0
        %v1303 = vadd.f32 0.0, %v1302
        %v1304 = vpop.f32.mrf.mxu0
        %v1305 = vadd.f32 0.0, %v1304
        %1306 = vmatmul.bf16.gmra.mxu0 %v780
        %v1307 = vpop.f32.mrf.mxu0
        %v1308 = vadd.f32 0.0, %v1307
        %v1309 = vpop.f32.mrf.mxu0
        %v1310 = vadd.f32 0.0, %v1309
        %1311 = vmatmul.bf16.gmra.mxu0 %v782
        %v1312 = vpop.f32.mrf.mxu0
        %v1313 = vadd.f32 0.0, %v1312
        %v1314 = vpop.f32.mrf.mxu0
        %v1315 = vadd.f32 0.0, %v1314
        %1316 = vmatmul.bf16.gmra.mxu0 %v784
        %v1317 = vpop.f32.mrf.mxu0
        %v1318 = vadd.f32 0.0, %v1317
        %v1319 = vpop.f32.mrf.mxu0
        %v1320 = vadd.f32 0.0, %v1319
        %1321 = vmatmul.bf16.gmra.mxu0 %v786
        %v1322 = vpop.f32.mrf.mxu0
        %v1323 = vadd.f32 0.0, %v1322
        %v1324 = vpop.f32.mrf.mxu0
        %v1325 = vadd.f32 0.0, %v1324
        %1326 = vmatmul.bf16.gmra.mxu0 %v788
        %v1327 = vpop.f32.mrf.mxu0
        %v1328 = vadd.f32 0.0, %v1327
        %v1329 = vpop.f32.mrf.mxu0
        %v1330 = vadd.f32 0.0, %v1329
        %1331 = vmatmul.bf16.gmra.mxu0 %v790
        %v1332 = vpop.f32.mrf.mxu0
        %v1333 = vadd.f32 0.0, %v1332
        %v1334 = vpop.f32.mrf.mxu0
        %v1335 = vadd.f32 0.0, %v1334
        %1336 = vmatmul.bf16.gmra.mxu0 %v792
        %v1337 = vpop.f32.mrf.mxu0
        %v1338 = vadd.f32 0.0, %v1337
        %v1339 = vpop.f32.mrf.mxu0
        %v1340 = vadd.f32 0.0, %v1339
        %1341 = vmatmul.bf16.gmra.mxu0 %v794
        %v1342 = vpop.f32.mrf.mxu0
        %v1343 = vadd.f32 0.0, %v1342
        %v1344 = vpop.f32.mrf.mxu0
        %v1345 = vadd.f32 0.0, %v1344
        %1346 = vmatmul.bf16.gmra.mxu0 %v796
        %v1347 = vpop.f32.mrf.mxu0
        %v1348 = vadd.f32 0.0, %v1347
        %v1349 = vpop.f32.mrf.mxu0
        %v1350 = vadd.f32 0.0, %v1349
        %1351 = vmatmul.bf16.gmra.mxu0 %v798
        %v1352 = vpop.f32.mrf.mxu0
        %v1353 = vadd.f32 0.0, %v1352
        %v1354 = vpop.f32.mrf.mxu0
        %v1355 = vadd.f32 0.0, %v1354
        %1356 = vmatmul.bf16.gmra.mxu0 %v800
        %v1357 = vpop.f32.mrf.mxu0
        %v1358 = vadd.f32 0.0, %v1357
        %v1359 = vpop.f32.mrf.mxu0
        %v1360 = vadd.f32 0.0, %v1359
        %1361 = vmatmul.bf16.gmra.mxu0 %v802
        %v1362 = vpop.f32.mrf.mxu0
        %v1363 = vadd.f32 0.0, %v1362
        %v1364 = vpop.f32.mrf.mxu0
        %v1365 = vadd.f32 0.0, %v1364
        %1366 = vmatmul.bf16.gmra.mxu0 %v804
        %v1367 = vpop.f32.mrf.mxu0
        %v1368 = vadd.f32 0.0, %v1367
        %v1369 = vpop.f32.mrf.mxu0
        %v1370 = vadd.f32 0.0, %v1369
        %1371 = vmatmul.bf16.gmra.mxu0 %v806
        %v1372 = vpop.f32.mrf.mxu0
        %v1373 = vadd.f32 0.0, %v1372
        %v1374 = vpop.f32.mrf.mxu0
        %v1375 = vadd.f32 0.0, %v1374
        %1376 = vmatmul.bf16.gmra.mxu0 %v808
        %v1377 = vpop.f32.mrf.mxu0
        %v1378 = vadd.f32 0.0, %v1377
        %v1379 = vpop.f32.mrf.mxu0
        %v1380 = vadd.f32 0.0, %v1379
        %1381 = vmatmul.bf16.gmra.mxu0 %v810
        %v1382 = vpop.f32.mrf.mxu0
        %v1383 = vadd.f32 0.0, %v1382
        %v1384 = vpop.f32.mrf.mxu0
        %v1385 = vadd.f32 0.0, %v1384
        %1386 = vmatmul.bf16.gmra.mxu0 %v812
        %v1387 = vpop.f32.mrf.mxu0
        %v1388 = vadd.f32 0.0, %v1387
        %v1389 = vpop.f32.mrf.mxu0
        %v1390 = vadd.f32 0.0, %v1389
        %1391 = vmatmul.bf16.gmra.mxu0 %v814
        %v1392 = vpop.f32.mrf.mxu0
        %v1393 = vadd.f32 0.0, %v1392
        %v1394 = vpop.f32.mrf.mxu0
        %v1395 = vadd.f32 0.0, %v1394
        %1396 = vmatmul.bf16.gmra.mxu0 %v816
        %v1397 = vpop.f32.mrf.mxu0
        %v1398 = vadd.f32 0.0, %v1397
        %v1399 = vpop.f32.mrf.mxu0
        %v1400 = vadd.f32 0.0, %v1399
        %1401 = vmatmul.bf16.gmra.mxu0 %v818
        %v1402 = vpop.f32.mrf.mxu0
        %v1403 = vadd.f32 0.0, %v1402
        %v1404 = vpop.f32.mrf.mxu0
        %v1405 = vadd.f32 0.0, %v1404
        %1406 = vmatmul.bf16.gmra.mxu0 %v820
        %v1407 = vpop.f32.mrf.mxu0
        %v1408 = vadd.f32 0.0, %v1407
        %v1409 = vpop.f32.mrf.mxu0
        %v1410 = vadd.f32 0.0, %v1409
        %1411 = vmatmul.bf16.gmra.mxu0 %v822
        %v1412 = vpop.f32.mrf.mxu0
        %v1413 = vadd.f32 0.0, %v1412
        %v1414 = vpop.f32.mrf.mxu0
        %v1415 = vadd.f32 0.0, %v1414
        %1416 = vmatmul.bf16.gmra.mxu0 %v824
        %v1417 = vpop.f32.mrf.mxu0
        %v1418 = vadd.f32 0.0, %v1417
        %v1419 = vpop.f32.mrf.mxu0
        %v1420 = vadd.f32 0.0, %v1419
        %1421 = vmatmul.bf16.gmra.mxu0 %v826
        %v1422 = vpop.f32.mrf.mxu0
        %v1423 = vadd.f32 0.0, %v1422
        %v1424 = vpop.f32.mrf.mxu0
        %v1425 = vadd.f32 0.0, %v1424
        %1426 = vmatmul.bf16.gmra.mxu0 %v828
        %v1427 = vpop.f32.mrf.mxu0
        %v1428 = vadd.f32 0.0, %v1427
        %v1429 = vpop.f32.mrf.mxu0
        %v1430 = vadd.f32 0.0, %v1429
        %1431 = vmatmul.bf16.gmra.mxu0 %v830
        %v1432 = vpop.f32.mrf.mxu0
        %v1433 = vadd.f32 0.0, %v1432
        %v1434 = vpop.f32.mrf.mxu0
        %v1435 = vadd.f32 0.0, %v1434
        %1436 = vmatmul.bf16.gmra.mxu0 %v832
        %v1437 = vpop.f32.mrf.mxu0
        %v1438 = vadd.f32 0.0, %v1437
        %v1439 = vpop.f32.mrf.mxu0
        %v1440 = vadd.f32 0.0, %v1439
        %1441 = vmatmul.bf16.gmra.mxu0 %v834
        %v1442 = vpop.f32.mrf.mxu0
        %v1443 = vadd.f32 0.0, %v1442
        %v1444 = vpop.f32.mrf.mxu0
        %v1445 = vadd.f32 0.0, %v1444
        %1446 = vmatmul.bf16.gmra.mxu0 %v836
        %v1447 = vpop.f32.mrf.mxu0
        %v1448 = vadd.f32 0.0, %v1447
        %v1449 = vpop.f32.mrf.mxu0
        %v1450 = vadd.f32 0.0, %v1449
        %1451 = vmatmul.bf16.gmra.mxu0 %v838
        %v1452 = vpop.f32.mrf.mxu0
        %v1453 = vadd.f32 0.0, %v1452
        %v1454 = vpop.f32.mrf.mxu0
        %v1455 = vadd.f32 0.0, %v1454
        %1456 = vmatmul.bf16.gmra.mxu0 %v840
        %v1457 = vpop.f32.mrf.mxu0
        %v1458 = vadd.f32 0.0, %v1457
        %v1459 = vpop.f32.mrf.mxu0
        %v1460 = vadd.f32 0.0, %v1459
        %1461 = vmatmul.bf16.gmra.mxu0 %v842
        %v1462 = vpop.f32.mrf.mxu0
        %v1463 = vadd.f32 0.0, %v1462
        %v1464 = vpop.f32.mrf.mxu0
        %v1465 = vadd.f32 0.0, %v1464
        %1466 = vmatmul.bf16.gmra.mxu0 %v844
        %v1467 = vpop.f32.mrf.mxu0
        %v1468 = vadd.f32 0.0, %v1467
        %v1469 = vpop.f32.mrf.mxu0
        %v1470 = vadd.f32 0.0, %v1469
        %1471 = vmatmul.bf16.gmra.mxu0 %v846
        %v1472 = vpop.f32.mrf.mxu0
        %v1473 = vadd.f32 0.0, %v1472
        %v1474 = vpop.f32.mrf.mxu0
        %v1475 = vadd.f32 0.0, %v1474
        %1476 = vmatmul.bf16.gmra.mxu0 %v848
        %v1477 = vpop.f32.mrf.mxu0
        %v1478 = vadd.f32 0.0, %v1477
        %v1479 = vpop.f32.mrf.mxu0
        %v1480 = vadd.f32 0.0, %v1479
        %1481 = vmatmul.bf16.gmra.mxu0 %v850
        %v1482 = vpop.f32.mrf.mxu0
        %v1483 = vadd.f32 0.0, %v1482
        %v1484 = vpop.f32.mrf.mxu0
        %v1485 = vadd.f32 0.0, %v1484
        %1486 = vmatmul.bf16.gmra.mxu0 %v852
        %v1487 = vpop.f32.mrf.mxu0
        %v1488 = vadd.f32 0.0, %v1487
        %v1489 = vpop.f32.mrf.mxu0
        %v1490 = vadd.f32 0.0, %v1489
        %1491 = vmatmul.bf16.gmra.mxu0 %v854
        %v1492 = vpop.f32.mrf.mxu0
        %v1493 = vadd.f32 0.0, %v1492
        %v1494 = vpop.f32.mrf.mxu0
        %v1495 = vadd.f32 0.0, %v1494
        %1496 = vmatmul.bf16.gmra.mxu0 %v856
        %v1497 = vpop.f32.mrf.mxu0
        %v1498 = vadd.f32 0.0, %v1497
        %v1499 = vpop.f32.mrf.mxu0
        %v1500 = vadd.f32 0.0, %v1499
        %1501 = vmatmul.bf16.gmra.mxu0 %v858
        %v1502 = vpop.f32.mrf.mxu0
        %v1503 = vadd.f32 0.0, %v1502
        %v1504 = vpop.f32.mrf.mxu0
        %v1505 = vadd.f32 0.0, %v1504
        %1506 = vmatmul.bf16.gmra.mxu0 %v860
        %v1507 = vpop.f32.mrf.mxu0
        %v1508 = vadd.f32 0.0, %v1507
        %v1509 = vpop.f32.mrf.mxu0
        %v1510 = vadd.f32 0.0, %v1509
        %1511 = vdwg.mxu0
        %1512 = vmatpush.bf16.msra.mxu0 0
        %1513 = vmatpush.bf16.msra.mxu0 0
        %1514 = vmatpush.bf16.msra.mxu0 0
        %1515 = vmatpush.bf16.msra.mxu0 0
        %1516 = vmatpush.bf16.msra.mxu0 0
        %1517 = vmatpush.bf16.msra.mxu0 0
        %1518 = vmatpush.bf16.msra.mxu0 %v1181
        %1519 = vmatpush.bf16.msra.mxu0 %v972
        %1520 = vmatmul.bf16.gmra.mxu0 %v985
        %v1521 = vpop.f32.mrf.mxu0
        %v1522 = vadd.f32 %v1193, %v1521
        %v1523 = vpop.f32.mrf.mxu0
        %v1524 = vadd.f32 %v1195, %v1523
        %1525 = vmatmul.bf16.gmra.mxu0 %v988
        %v1526 = vpop.f32.mrf.mxu0
        %v1527 = vadd.f32 %v1198, %v1526
        %v1528 = vpop.f32.mrf.mxu0
        %v1529 = vadd.f32 %v1200, %v1528
        %1530 = vmatmul.bf16.gmra.mxu0 %v991
        %v1531 = vpop.f32.mrf.mxu0
        %v1532 = vadd.f32 %v1203, %v1531
        %v1533 = vpop.f32.mrf.mxu0
        %v1534 = vadd.f32 %v1205, %v1533
        %1535 = vmatmul.bf16.gmra.mxu0 %v994
        %v1536 = vpop.f32.mrf.mxu0
        %v1537 = vadd.f32 %v1208, %v1536
        %v1538 = vpop.f32.mrf.mxu0
        %v1539 = vadd.f32 %v1210, %v1538
        %1540 = vmatmul.bf16.gmra.mxu0 %v997
        %v1541 = vpop.f32.mrf.mxu0
        %v1542 = vadd.f32 %v1213, %v1541
        %v1543 = vpop.f32.mrf.mxu0
        %v1544 = vadd.f32 %v1215, %v1543
        %1545 = vmatmul.bf16.gmra.mxu0 %v1000
        %v1546 = vpop.f32.mrf.mxu0
        %v1547 = vadd.f32 %v1218, %v1546
        %v1548 = vpop.f32.mrf.mxu0
        %v1549 = vadd.f32 %v1220, %v1548
        %1550 = vmatmul.bf16.gmra.mxu0 %v1003
        %v1551 = vpop.f32.mrf.mxu0
        %v1552 = vadd.f32 %v1223, %v1551
        %v1553 = vpop.f32.mrf.mxu0
        %v1554 = vadd.f32 %v1225, %v1553
        %1555 = vmatmul.bf16.gmra.mxu0 %v1006
        %v1556 = vpop.f32.mrf.mxu0
        %v1557 = vadd.f32 %v1228, %v1556
        %v1558 = vpop.f32.mrf.mxu0
        %v1559 = vadd.f32 %v1230, %v1558
        %1560 = vmatmul.bf16.gmra.mxu0 %v1009
        %v1561 = vpop.f32.mrf.mxu0
        %v1562 = vadd.f32 %v1233, %v1561
        %v1563 = vpop.f32.mrf.mxu0
        %v1564 = vadd.f32 %v1235, %v1563
        %1565 = vmatmul.bf16.gmra.mxu0 %v1012
        %v1566 = vpop.f32.mrf.mxu0
        %v1567 = vadd.f32 %v1238, %v1566
        %v1568 = vpop.f32.mrf.mxu0
        %v1569 = vadd.f32 %v1240, %v1568
        %1570 = vmatmul.bf16.gmra.mxu0 %v1015
        %v1571 = vpop.f32.mrf.mxu0
        %v1572 = vadd.f32 %v1243, %v1571
        %v1573 = vpop.f32.mrf.mxu0
        %v1574 = vadd.f32 %v1245, %v1573
        %1575 = vmatmul.bf16.gmra.mxu0 %v1018
        %v1576 = vpop.f32.mrf.mxu0
        %v1577 = vadd.f32 %v1248, %v1576
        %v1578 = vpop.f32.mrf.mxu0
        %v1579 = vadd.f32 %v1250, %v1578
        %1580 = vmatmul.bf16.gmra.mxu0 %v1021
        %v1581 = vpop.f32.mrf.mxu0
        %v1582 = vadd.f32 %v1253, %v1581
        %v1583 = vpop.f32.mrf.mxu0
        %v1584 = vadd.f32 %v1255, %v1583
        %1585 = vmatmul.bf16.gmra.mxu0 %v1024
        %v1586 = vpop.f32.mrf.mxu0
        %v1587 = vadd.f32 %v1258, %v1586
        %v1588 = vpop.f32.mrf.mxu0
        %v1589 = vadd.f32 %v1260, %v1588
        %1590 = vmatmul.bf16.gmra.mxu0 %v1027
        %v1591 = vpop.f32.mrf.mxu0
        %v1592 = vadd.f32 %v1263, %v1591
        %v1593 = vpop.f32.mrf.mxu0
        %v1594 = vadd.f32 %v1265, %v1593
        %1595 = vmatmul.bf16.gmra.mxu0 %v1030
        %v1596 = vpop.f32.mrf.mxu0
        %v1597 = vadd.f32 %v1268, %v1596
        %v1598 = vpop.f32.mrf.mxu0
        %v1599 = vadd.f32 %v1270, %v1598
        %1600 = vmatmul.bf16.gmra.mxu0 %v1033
        %v1601 = vpop.f32.mrf.mxu0
        %v1602 = vadd.f32 %v1273, %v1601
        %v1603 = vpop.f32.mrf.mxu0
        %v1604 = vadd.f32 %v1275, %v1603
        %1605 = vmatmul.bf16.gmra.mxu0 %v1036
        %v1606 = vpop.f32.mrf.mxu0
        %v1607 = vadd.f32 %v1278, %v1606
        %v1608 = vpop.f32.mrf.mxu0
        %v1609 = vadd.f32 %v1280, %v1608
        %1610 = vmatmul.bf16.gmra.mxu0 %v1039
        %v1611 = vpop.f32.mrf.mxu0
        %v1612 = vadd.f32 %v1283, %v1611
        %v1613 = vpop.f32.mrf.mxu0
        %v1614 = vadd.f32 %v1285, %v1613
        %1615 = vmatmul.bf16.gmra.mxu0 %v1042
        %v1616 = vpop.f32.mrf.mxu0
        %v1617 = vadd.f32 %v1288, %v1616
        %v1618 = vpop.f32.mrf.mxu0
        %v1619 = vadd.f32 %v1290, %v1618
        %1620 = vmatmul.bf16.gmra.mxu0 %v1045
        %v1621 = vpop.f32.mrf.mxu0
        %v1622 = vadd.f32 %v1293, %v1621
        %v1623 = vpop.f32.mrf.mxu0
        %v1624 = vadd.f32 %v1295, %v1623
        %1625 = vmatmul.bf16.gmra.mxu0 %v1048
        %v1626 = vpop.f32.mrf.mxu0
        %v1627 = vadd.f32 %v1298, %v1626
        %v1628 = vpop.f32.mrf.mxu0
        %v1629 = vadd.f32 %v1300, %v1628
        %1630 = vmatmul.bf16.gmra.mxu0 %v1051
        %v1631 = vpop.f32.mrf.mxu0
        %v1632 = vadd.f32 %v1303, %v1631
        %v1633 = vpop.f32.mrf.mxu0
        %v1634 = vadd.f32 %v1305, %v1633
        %1635 = vmatmul.bf16.gmra.mxu0 %v1054
        %v1636 = vpop.f32.mrf.mxu0
        %v1637 = vadd.f32 %v1308, %v1636
        %v1638 = vpop.f32.mrf.mxu0
        %v1639 = vadd.f32 %v1310, %v1638
        %1640 = vmatmul.bf16.gmra.mxu0 %v1057
        %v1641 = vpop.f32.mrf.mxu0
        %v1642 = vadd.f32 %v1313, %v1641
        %v1643 = vpop.f32.mrf.mxu0
        %v1644 = vadd.f32 %v1315, %v1643
        %1645 = vmatmul.bf16.gmra.mxu0 %v1060
        %v1646 = vpop.f32.mrf.mxu0
        %v1647 = vadd.f32 %v1318, %v1646
        %v1648 = vpop.f32.mrf.mxu0
        %v1649 = vadd.f32 %v1320, %v1648
        %1650 = vmatmul.bf16.gmra.mxu0 %v1063
        %v1651 = vpop.f32.mrf.mxu0
        %v1652 = vadd.f32 %v1323, %v1651
        %v1653 = vpop.f32.mrf.mxu0
        %v1654 = vadd.f32 %v1325, %v1653
        %1655 = vmatmul.bf16.gmra.mxu0 %v1066
        %v1656 = vpop.f32.mrf.mxu0
        %v1657 = vadd.f32 %v1328, %v1656
        %v1658 = vpop.f32.mrf.mxu0
        %v1659 = vadd.f32 %v1330, %v1658
        %1660 = vmatmul.bf16.gmra.mxu0 %v1069
        %v1661 = vpop.f32.mrf.mxu0
        %v1662 = vadd.f32 %v1333, %v1661
        %v1663 = vpop.f32.mrf.mxu0
        %v1664 = vadd.f32 %v1335, %v1663
        %1665 = vmatmul.bf16.gmra.mxu0 %v1072
        %v1666 = vpop.f32.mrf.mxu0
        %v1667 = vadd.f32 %v1338, %v1666
        %v1668 = vpop.f32.mrf.mxu0
        %v1669 = vadd.f32 %v1340, %v1668
        %1670 = vmatmul.bf16.gmra.mxu0 %v1075
        %v1671 = vpop.f32.mrf.mxu0
        %v1672 = vadd.f32 %v1343, %v1671
        %v1673 = vpop.f32.mrf.mxu0
        %v1674 = vadd.f32 %v1345, %v1673
        %1675 = vmatmul.bf16.gmra.mxu0 %v1078
        %v1676 = vpop.f32.mrf.mxu0
        %v1677 = vadd.f32 %v1348, %v1676
        %v1678 = vpop.f32.mrf.mxu0
        %v1679 = vadd.f32 %v1350, %v1678
        %1680 = vmatmul.bf16.gmra.mxu0 %v1081
        %v1681 = vpop.f32.mrf.mxu0
        %v1682 = vadd.f32 %v1353, %v1681
        %v1683 = vpop.f32.mrf.mxu0
        %v1684 = vadd.f32 %v1355, %v1683
        %1685 = vmatmul.bf16.gmra.mxu0 %v1084
        %v1686 = vpop.f32.mrf.mxu0
        %v1687 = vadd.f32 %v1358, %v1686
        %v1688 = vpop.f32.mrf.mxu0
        %v1689 = vadd.f32 %v1360, %v1688
        %1690 = vmatmul.bf16.gmra.mxu0 %v1087
        %v1691 = vpop.f32.mrf.mxu0
        %v1692 = vadd.f32 %v1363, %v1691
        %v1693 = vpop.f32.mrf.mxu0
        %v1694 = vadd.f32 %v1365, %v1693
        %1695 = vmatmul.bf16.gmra.mxu0 %v1090
        %v1696 = vpop.f32.mrf.mxu0
        %v1697 = vadd.f32 %v1368, %v1696
        %v1698 = vpop.f32.mrf.mxu0
        %v1699 = vadd.f32 %v1370, %v1698
        %1700 = vmatmul.bf16.gmra.mxu0 %v1093
        %v1701 = vpop.f32.mrf.mxu0
        %v1702 = vadd.f32 %v1373, %v1701
        %v1703 = vpop.f32.mrf.mxu0
        %v1704 = vadd.f32 %v1375, %v1703
        %1705 = vmatmul.bf16.gmra.mxu0 %v1096
        %v1706 = vpop.f32.mrf.mxu0
        %v1707 = vadd.f32 %v1378, %v1706
        %v1708 = vpop.f32.mrf.mxu0
        %v1709 = vadd.f32 %v1380, %v1708
        %1710 = vmatmul.bf16.gmra.mxu0 %v1099
        %v1711 = vpop.f32.mrf.mxu0
        %v1712 = vadd.f32 %v1383, %v1711
        %v1713 = vpop.f32.mrf.mxu0
        %v1714 = vadd.f32 %v1385, %v1713
        %1715 = vmatmul.bf16.gmra.mxu0 %v1102
        %v1716 = vpop.f32.mrf.mxu0
        %v1717 = vadd.f32 %v1388, %v1716
        %v1718 = vpop.f32.mrf.mxu0
        %v1719 = vadd.f32 %v1390, %v1718
        %1720 = vmatmul.bf16.gmra.mxu0 %v1105
        %v1721 = vpop.f32.mrf.mxu0
        %v1722 = vadd.f32 %v1393, %v1721
        %v1723 = vpop.f32.mrf.mxu0
        %v1724 = vadd.f32 %v1395, %v1723
        %1725 = vmatmul.bf16.gmra.mxu0 %v1108
        %v1726 = vpop.f32.mrf.mxu0
        %v1727 = vadd.f32 %v1398, %v1726
        %v1728 = vpop.f32.mrf.mxu0
        %v1729 = vadd.f32 %v1400, %v1728
        %1730 = vmatmul.bf16.gmra.mxu0 %v1111
        %v1731 = vpop.f32.mrf.mxu0
        %v1732 = vadd.f32 %v1403, %v1731
        %v1733 = vpop.f32.mrf.mxu0
        %v1734 = vadd.f32 %v1405, %v1733
        %1735 = vmatmul.bf16.gmra.mxu0 %v1114
        %v1736 = vpop.f32.mrf.mxu0
        %v1737 = vadd.f32 %v1408, %v1736
        %v1738 = vpop.f32.mrf.mxu0
        %v1739 = vadd.f32 %v1410, %v1738
        %1740 = vmatmul.bf16.gmra.mxu0 %v1117
        %v1741 = vpop.f32.mrf.mxu0
        %v1742 = vadd.f32 %v1413, %v1741
        %v1743 = vpop.f32.mrf.mxu0
        %v1744 = vadd.f32 %v1415, %v1743
        %1745 = vmatmul.bf16.gmra.mxu0 %v1120
        %v1746 = vpop.f32.mrf.mxu0
        %v1747 = vadd.f32 %v1418, %v1746
        %v1748 = vpop.f32.mrf.mxu0
        %v1749 = vadd.f32 %v1420, %v1748
        %1750 = vmatmul.bf16.gmra.mxu0 %v1123
        %v1751 = vpop.f32.mrf.mxu0
        %v1752 = vadd.f32 %v1423, %v1751
        %v1753 = vpop.f32.mrf.mxu0
        %v1754 = vadd.f32 %v1425, %v1753
        %1755 = vmatmul.bf16.gmra.mxu0 %v1126
        %v1756 = vpop.f32.mrf.mxu0
        %v1757 = vadd.f32 %v1428, %v1756
        %v1758 = vpop.f32.mrf.mxu0
        %v1759 = vadd.f32 %v1430, %v1758
        %1760 = vmatmul.bf16.gmra.mxu0 %v1129
        %v1761 = vpop.f32.mrf.mxu0
        %v1762 = vadd.f32 %v1433, %v1761
        %v1763 = vpop.f32.mrf.mxu0
        %v1764 = vadd.f32 %v1435, %v1763
        %1765 = vmatmul.bf16.gmra.mxu0 %v1132
        %v1766 = vpop.f32.mrf.mxu0
        %v1767 = vadd.f32 %v1438, %v1766
        %v1768 = vpop.f32.mrf.mxu0
        %v1769 = vadd.f32 %v1440, %v1768
        %1770 = vmatmul.bf16.gmra.mxu0 %v1135
        %v1771 = vpop.f32.mrf.mxu0
        %v1772 = vadd.f32 %v1443, %v1771
        %v1773 = vpop.f32.mrf.mxu0
        %v1774 = vadd.f32 %v1445, %v1773
        %1775 = vmatmul.bf16.gmra.mxu0 %v1138
        %v1776 = vpop.f32.mrf.mxu0
        %v1777 = vadd.f32 %v1448, %v1776
        %v1778 = vpop.f32.mrf.mxu0
        %v1779 = vadd.f32 %v1450, %v1778
        %1780 = vmatmul.bf16.gmra.mxu0 %v1141
        %v1781 = vpop.f32.mrf.mxu0
        %v1782 = vadd.f32 %v1453, %v1781
        %v1783 = vpop.f32.mrf.mxu0
        %v1784 = vadd.f32 %v1455, %v1783
        %1785 = vmatmul.bf16.gmra.mxu0 %v1144
        %v1786 = vpop.f32.mrf.mxu0
        %v1787 = vadd.f32 %v1458, %v1786
        %v1788 = vpop.f32.mrf.mxu0
        %v1789 = vadd.f32 %v1460, %v1788
        %1790 = vmatmul.bf16.gmra.mxu0 %v1147
        %v1791 = vpop.f32.mrf.mxu0
        %v1792 = vadd.f32 %v1463, %v1791
        %v1793 = vpop.f32.mrf.mxu0
        %v1794 = vadd.f32 %v1465, %v1793
        %1795 = vmatmul.bf16.gmra.mxu0 %v1150
        %v1796 = vpop.f32.mrf.mxu0
        %v1797 = vadd.f32 %v1468, %v1796
        %v1798 = vpop.f32.mrf.mxu0
        %v1799 = vadd.f32 %v1470, %v1798
        %1800 = vmatmul.bf16.gmra.mxu0 %v1153
        %v1801 = vpop.f32.mrf.mxu0
        %v1802 = vadd.f32 %v1473, %v1801
        %v1803 = vpop.f32.mrf.mxu0
        %v1804 = vadd.f32 %v1475, %v1803
        %1805 = vmatmul.bf16.gmra.mxu0 %v1156
        %v1806 = vpop.f32.mrf.mxu0
        %v1807 = vadd.f32 %v1478, %v1806
        %v1808 = vpop.f32.mrf.mxu0
        %v1809 = vadd.f32 %v1480, %v1808
        %1810 = vmatmul.bf16.gmra.mxu0 %v1159
        %v1811 = vpop.f32.mrf.mxu0
        %v1812 = vadd.f32 %v1483, %v1811
        %v1813 = vpop.f32.mrf.mxu0
        %v1814 = vadd.f32 %v1485, %v1813
        %1815 = vmatmul.bf16.gmra.mxu0 %v1162
        %v1816 = vpop.f32.mrf.mxu0
        %v1817 = vadd.f32 %v1488, %v1816
        %v1818 = vpop.f32.mrf.mxu0
        %v1819 = vadd.f32 %v1490, %v1818
        %1820 = vmatmul.bf16.gmra.mxu0 %v1165
        %v1821 = vpop.f32.mrf.mxu0
        %v1822 = vadd.f32 %v1493, %v1821
        %v1823 = vpop.f32.mrf.mxu0
        %v1824 = vadd.f32 %v1495, %v1823
        %1825 = vmatmul.bf16.gmra.mxu0 %v1168
        %v1826 = vpop.f32.mrf.mxu0
        %v1827 = vadd.f32 %v1498, %v1826
        %v1828 = vpop.f32.mrf.mxu0
        %v1829 = vadd.f32 %v1500, %v1828
        %1830 = vmatmul.bf16.gmra.mxu0 %v1171
        %v1831 = vpop.f32.mrf.mxu0
        %v1832 = vadd.f32 %v1503, %v1831
        %v1833 = vpop.f32.mrf.mxu0
        %v1834 = vadd.f32 %v1505, %v1833
        %1835 = vmatmul.bf16.gmra.mxu0 %v1174
        %v1836 = vpop.f32.mrf.mxu0
        %v1837 = vadd.f32 %v1508, %v1836
        %v1838 = vpop.f32.mrf.mxu0
        %v1839 = vadd.f32 %v1510, %v1838
        %1840 = vdwg.mxu0
        %v1841 = vld [vmem:[%s2] sm:$0x1]
        %v1843 = vperm.slane %v1841, 0
        %v1845 = vmul.f32 %v1522, %v1843
        %v1846 = vmul.f32 %v1524, %v1843
        %v1847 = vmul.f32 %v1527, %v1843
        %v1848 = vmul.f32 %v1529, %v1843
        %v1849 = vmul.f32 %v1532, %v1843
        %v1850 = vmul.f32 %v1534, %v1843
        %v1851 = vmul.f32 %v1537, %v1843
        %v1852 = vmul.f32 %v1539, %v1843
        %v1853 = vmul.f32 %v1542, %v1843
        %v1854 = vmul.f32 %v1544, %v1843
        %v1855 = vmul.f32 %v1547, %v1843
        %v1856 = vmul.f32 %v1549, %v1843
        %v1857 = vmul.f32 %v1552, %v1843
        %v1858 = vmul.f32 %v1554, %v1843
        %v1859 = vmul.f32 %v1557, %v1843
        %v1860 = vmul.f32 %v1559, %v1843
        %v1861 = vmul.f32 %v1562, %v1843
        %v1862 = vmul.f32 %v1564, %v1843
        %v1863 = vmul.f32 %v1567, %v1843
        %v1864 = vmul.f32 %v1569, %v1843
        %v1865 = vmul.f32 %v1572, %v1843
        %v1866 = vmul.f32 %v1574, %v1843
        %v1867 = vmul.f32 %v1577, %v1843
        %v1868 = vmul.f32 %v1579, %v1843
        %v1869 = vmul.f32 %v1582, %v1843
        %v1870 = vmul.f32 %v1584, %v1843
        %v1871 = vmul.f32 %v1587, %v1843
        %v1872 = vmul.f32 %v1589, %v1843
        %v1873 = vmul.f32 %v1592, %v1843
        %v1874 = vmul.f32 %v1594, %v1843
        %v1875 = vmul.f32 %v1597, %v1843
        %v1876 = vmul.f32 %v1599, %v1843
        %v1877 = vmul.f32 %v1602, %v1843
        %v1878 = vmul.f32 %v1604, %v1843
        %v1879 = vmul.f32 %v1607, %v1843
        %v1880 = vmul.f32 %v1609, %v1843
        %v1881 = vmul.f32 %v1612, %v1843
        %v1882 = vmul.f32 %v1614, %v1843
        %v1883 = vmul.f32 %v1617, %v1843
        %v1884 = vmul.f32 %v1619, %v1843
        %v1885 = vmul.f32 %v1622, %v1843
        %v1886 = vmul.f32 %v1624, %v1843
        %v1887 = vmul.f32 %v1627, %v1843
        %v1888 = vmul.f32 %v1629, %v1843
        %v1889 = vmul.f32 %v1632, %v1843
        %v1890 = vmul.f32 %v1634, %v1843
        %v1891 = vmul.f32 %v1637, %v1843
        %v1892 = vmul.f32 %v1639, %v1843
        %v1893 = vmul.f32 %v1642, %v1843
        %v1894 = vmul.f32 %v1644, %v1843
        %v1895 = vmul.f32 %v1647, %v1843
        %v1896 = vmul.f32 %v1649, %v1843
        %v1897 = vmul.f32 %v1652, %v1843
        %v1898 = vmul.f32 %v1654, %v1843
        %v1899 = vmul.f32 %v1657, %v1843
        %v1900 = vmul.f32 %v1659, %v1843
        %v1901 = vmul.f32 %v1662, %v1843
        %v1902 = vmul.f32 %v1664, %v1843
        %v1903 = vmul.f32 %v1667, %v1843
        %v1904 = vmul.f32 %v1669, %v1843
        %v1905 = vmul.f32 %v1672, %v1843
        %v1906 = vmul.f32 %v1674, %v1843
        %v1907 = vmul.f32 %v1677, %v1843
        %v1908 = vmul.f32 %v1679, %v1843
        %v1909 = vmul.f32 %v1682, %v1843
        %v1910 = vmul.f32 %v1684, %v1843
        %v1911 = vmul.f32 %v1687, %v1843
        %v1912 = vmul.f32 %v1689, %v1843
        %v1913 = vmul.f32 %v1692, %v1843
        %v1914 = vmul.f32 %v1694, %v1843
        %v1915 = vmul.f32 %v1697, %v1843
        %v1916 = vmul.f32 %v1699, %v1843
        %v1917 = vmul.f32 %v1702, %v1843
        %v1918 = vmul.f32 %v1704, %v1843
        %v1919 = vmul.f32 %v1707, %v1843
        %v1920 = vmul.f32 %v1709, %v1843
        %v1921 = vmul.f32 %v1712, %v1843
        %v1922 = vmul.f32 %v1714, %v1843
        %v1923 = vmul.f32 %v1717, %v1843
        %v1924 = vmul.f32 %v1719, %v1843
        %v1925 = vmul.f32 %v1722, %v1843
        %v1926 = vmul.f32 %v1724, %v1843
        %v1927 = vmul.f32 %v1727, %v1843
        %v1928 = vmul.f32 %v1729, %v1843
        %v1929 = vmul.f32 %v1732, %v1843
        %v1930 = vmul.f32 %v1734, %v1843
        %v1931 = vmul.f32 %v1737, %v1843
        %v1932 = vmul.f32 %v1739, %v1843
        %v1933 = vmul.f32 %v1742, %v1843
        %v1934 = vmul.f32 %v1744, %v1843
        %v1935 = vmul.f32 %v1747, %v1843
        %v1936 = vmul.f32 %v1749, %v1843
        %v1937 = vmul.f32 %v1752, %v1843
        %v1938 = vmul.f32 %v1754, %v1843
        %v1939 = vmul.f32 %v1757, %v1843
        %v1940 = vmul.f32 %v1759, %v1843
        %v1941 = vmul.f32 %v1762, %v1843
        %v1942 = vmul.f32 %v1764, %v1843
        %v1943 = vmul.f32 %v1767, %v1843
        %v1944 = vmul.f32 %v1769, %v1843
        %v1945 = vmul.f32 %v1772, %v1843
        %v1946 = vmul.f32 %v1774, %v1843
        %v1947 = vmul.f32 %v1777, %v1843
        %v1948 = vmul.f32 %v1779, %v1843
        %v1949 = vmul.f32 %v1782, %v1843
        %v1950 = vmul.f32 %v1784, %v1843
        %v1951 = vmul.f32 %v1787, %v1843
        %v1952 = vmul.f32 %v1789, %v1843
        %v1953 = vmul.f32 %v1792, %v1843
        %v1954 = vmul.f32 %v1794, %v1843
        %v1955 = vmul.f32 %v1797, %v1843
        %v1956 = vmul.f32 %v1799, %v1843
        %v1957 = vmul.f32 %v1802, %v1843
        %v1958 = vmul.f32 %v1804, %v1843
        %v1959 = vmul.f32 %v1807, %v1843
        %v1960 = vmul.f32 %v1809, %v1843
        %v1961 = vmul.f32 %v1812, %v1843
        %v1962 = vmul.f32 %v1814, %v1843
        %v1963 = vmul.f32 %v1817, %v1843
        %v1964 = vmul.f32 %v1819, %v1843
        %v1965 = vmul.f32 %v1822, %v1843
        %v1966 = vmul.f32 %v1824, %v1843
        %v1967 = vmul.f32 %v1827, %v1843
        %v1968 = vmul.f32 %v1829, %v1843
        %v1969 = vmul.f32 %v1832, %v1843
        %v1970 = vmul.f32 %v1834, %v1843
        %v1971 = vmul.f32 %v1837, %v1843
        %v1972 = vmul.f32 %v1839, %v1843
        %v1973 = vld [vmem:[%s3] sm:$0x1]
        %v1975 = vperm.slane %v1973, 0
        %v1977 = vadd.f32 %v1845, %v1975
        %v1978 = vadd.f32 %v1846, %v1975
        %v1979 = vadd.f32 %v1847, %v1975
        %v1980 = vadd.f32 %v1848, %v1975
        %v1981 = vadd.f32 %v1849, %v1975
        %v1982 = vadd.f32 %v1850, %v1975
        %v1983 = vadd.f32 %v1851, %v1975
        %v1984 = vadd.f32 %v1852, %v1975
        %v1985 = vadd.f32 %v1853, %v1975
        %v1986 = vadd.f32 %v1854, %v1975
        %v1987 = vadd.f32 %v1855, %v1975
        %v1988 = vadd.f32 %v1856, %v1975
        %v1989 = vadd.f32 %v1857, %v1975
        %v1990 = vadd.f32 %v1858, %v1975
        %v1991 = vadd.f32 %v1859, %v1975
        %v1992 = vadd.f32 %v1860, %v1975
        %v1993 = vadd.f32 %v1861, %v1975
        %v1994 = vadd.f32 %v1862, %v1975
        %v1995 = vadd.f32 %v1863, %v1975
        %v1996 = vadd.f32 %v1864, %v1975
        %v1997 = vadd.f32 %v1865, %v1975
        %v1998 = vadd.f32 %v1866, %v1975
        %v1999 = vadd.f32 %v1867, %v1975
        %v2000 = vadd.f32 %v1868, %v1975
        %v2001 = vadd.f32 %v1869, %v1975
        %v2002 = vadd.f32 %v1870, %v1975
        %v2003 = vadd.f32 %v1871, %v1975
        %v2004 = vadd.f32 %v1872, %v1975
        %v2005 = vadd.f32 %v1873, %v1975
        %v2006 = vadd.f32 %v1874, %v1975
        %v2007 = vadd.f32 %v1875, %v1975
        %v2008 = vadd.f32 %v1876, %v1975
        %v2009 = vadd.f32 %v1877, %v1975
        %v2010 = vadd.f32 %v1878, %v1975
        %v2011 = vadd.f32 %v1879, %v1975
        %v2012 = vadd.f32 %v1880, %v1975
        %v2013 = vadd.f32 %v1881, %v1975
        %v2014 = vadd.f32 %v1882, %v1975
        %v2015 = vadd.f32 %v1883, %v1975
        %v2016 = vadd.f32 %v1884, %v1975
        %v2017 = vadd.f32 %v1885, %v1975
        %v2018 = vadd.f32 %v1886, %v1975
        %v2019 = vadd.f32 %v1887, %v1975
        %v2020 = vadd.f32 %v1888, %v1975
        %v2021 = vadd.f32 %v1889, %v1975
        %v2022 = vadd.f32 %v1890, %v1975
        %v2023 = vadd.f32 %v1891, %v1975
        %v2024 = vadd.f32 %v1892, %v1975
        %v2025 = vadd.f32 %v1893, %v1975
        %v2026 = vadd.f32 %v1894, %v1975
        %v2027 = vadd.f32 %v1895, %v1975
        %v2028 = vadd.f32 %v1896, %v1975
        %v2029 = vadd.f32 %v1897, %v1975
        %v2030 = vadd.f32 %v1898, %v1975
        %v2031 = vadd.f32 %v1899, %v1975
        %v2032 = vadd.f32 %v1900, %v1975
        %v2033 = vadd.f32 %v1901, %v1975
        %v2034 = vadd.f32 %v1902, %v1975
        %v2035 = vadd.f32 %v1903, %v1975
        %v2036 = vadd.f32 %v1904, %v1975
        %v2037 = vadd.f32 %v1905, %v1975
        %v2038 = vadd.f32 %v1906, %v1975
        %v2039 = vadd.f32 %v1907, %v1975
        %v2040 = vadd.f32 %v1908, %v1975
        %v2041 = vadd.f32 %v1909, %v1975
        %v2042 = vadd.f32 %v1910, %v1975
        %v2043 = vadd.f32 %v1911, %v1975
        %v2044 = vadd.f32 %v1912, %v1975
        %v2045 = vadd.f32 %v1913, %v1975
        %v2046 = vadd.f32 %v1914, %v1975
        %v2047 = vadd.f32 %v1915, %v1975
        %v2048 = vadd.f32 %v1916, %v1975
        %v2049 = vadd.f32 %v1917, %v1975
        %v2050 = vadd.f32 %v1918, %v1975
        %v2051 = vadd.f32 %v1919, %v1975
        %v2052 = vadd.f32 %v1920, %v1975
        %v2053 = vadd.f32 %v1921, %v1975
        %v2054 = vadd.f32 %v1922, %v1975
        %v2055 = vadd.f32 %v1923, %v1975
        %v2056 = vadd.f32 %v1924, %v1975
        %v2057 = vadd.f32 %v1925, %v1975
        %v2058 = vadd.f32 %v1926, %v1975
        %v2059 = vadd.f32 %v1927, %v1975
        %v2060 = vadd.f32 %v1928, %v1975
        %v2061 = vadd.f32 %v1929, %v1975
        %v2062 = vadd.f32 %v1930, %v1975
        %v2063 = vadd.f32 %v1931, %v1975
        %v2064 = vadd.f32 %v1932, %v1975
        %v2065 = vadd.f32 %v1933, %v1975
        %v2066 = vadd.f32 %v1934, %v1975
        %v2067 = vadd.f32 %v1935, %v1975
        %v2068 = vadd.f32 %v1936, %v1975
        %v2069 = vadd.f32 %v1937, %v1975
        %v2070 = vadd.f32 %v1938, %v1975
        %v2071 = vadd.f32 %v1939, %v1975
        %v2072 = vadd.f32 %v1940, %v1975
        %v2073 = vadd.f32 %v1941, %v1975
        %v2074 = vadd.f32 %v1942, %v1975
        %v2075 = vadd.f32 %v1943, %v1975
        %v2076 = vadd.f32 %v1944, %v1975
        %v2077 = vadd.f32 %v1945, %v1975
        %v2078 = vadd.f32 %v1946, %v1975
        %v2079 = vadd.f32 %v1947, %v1975
        %v2080 = vadd.f32 %v1948, %v1975
        %v2081 = vadd.f32 %v1949, %v1975
        %v2082 = vadd.f32 %v1950, %v1975
        %v2083 = vadd.f32 %v1951, %v1975
        %v2084 = vadd.f32 %v1952, %v1975
        %v2085 = vadd.f32 %v1953, %v1975
        %v2086 = vadd.f32 %v1954, %v1975
        %v2087 = vadd.f32 %v1955, %v1975
        %v2088 = vadd.f32 %v1956, %v1975
        %v2089 = vadd.f32 %v1957, %v1975
        %v2090 = vadd.f32 %v1958, %v1975
        %v2091 = vadd.f32 %v1959, %v1975
        %v2092 = vadd.f32 %v1960, %v1975
        %v2093 = vadd.f32 %v1961, %v1975
        %v2094 = vadd.f32 %v1962, %v1975
        %v2095 = vadd.f32 %v1963, %v1975
        %v2096 = vadd.f32 %v1964, %v1975
        %v2097 = vadd.f32 %v1965, %v1975
        %v2098 = vadd.f32 %v1966, %v1975
        %v2099 = vadd.f32 %v1967, %v1975
        %v2100 = vadd.f32 %v1968, %v1975
        %v2101 = vadd.f32 %v1969, %v1975
        %v2102 = vadd.f32 %v1970, %v1975
        %v2103 = vadd.f32 %v1971, %v1975
        %v2104 = vadd.f32 %v1972, %v1975
        %v2105 = vmax.f32 %v1977, 0.0
        %v2106 = vmax.f32 %v1978, 0.0
        %v2107 = vmax.f32 %v1979, 0.0
        %v2108 = vmax.f32 %v1980, 0.0
        %v2109 = vmax.f32 %v1981, 0.0
        %v2110 = vmax.f32 %v1982, 0.0
        %v2111 = vmax.f32 %v1983, 0.0
        %v2112 = vmax.f32 %v1984, 0.0
        %v2113 = vmax.f32 %v1985, 0.0
        %v2114 = vmax.f32 %v1986, 0.0
        %v2115 = vmax.f32 %v1987, 0.0
        %v2116 = vmax.f32 %v1988, 0.0
        %v2117 = vmax.f32 %v1989, 0.0
        %v2118 = vmax.f32 %v1990, 0.0
        %v2119 = vmax.f32 %v1991, 0.0
        %v2120 = vmax.f32 %v1992, 0.0
        %v2121 = vmax.f32 %v1993, 0.0
        %v2122 = vmax.f32 %v1994, 0.0
        %v2123 = vmax.f32 %v1995, 0.0
        %v2124 = vmax.f32 %v1996, 0.0
        %v2125 = vmax.f32 %v1997, 0.0
        %v2126 = vmax.f32 %v1998, 0.0
        %v2127 = vmax.f32 %v1999, 0.0
        %v2128 = vmax.f32 %v2000, 0.0
        %v2129 = vmax.f32 %v2001, 0.0
        %v2130 = vmax.f32 %v2002, 0.0
        %v2131 = vmax.f32 %v2003, 0.0
        %v2132 = vmax.f32 %v2004, 0.0
        %v2133 = vmax.f32 %v2005, 0.0
        %v2134 = vmax.f32 %v2006, 0.0
        %v2135 = vmax.f32 %v2007, 0.0
        %v2136 = vmax.f32 %v2008, 0.0
        %v2137 = vmax.f32 %v2009, 0.0
        %v2138 = vmax.f32 %v2010, 0.0
        %v2139 = vmax.f32 %v2011, 0.0
        %v2140 = vmax.f32 %v2012, 0.0
        %v2141 = vmax.f32 %v2013, 0.0
        %v2142 = vmax.f32 %v2014, 0.0
        %v2143 = vmax.f32 %v2015, 0.0
        %v2144 = vmax.f32 %v2016, 0.0
        %v2145 = vmax.f32 %v2017, 0.0
        %v2146 = vmax.f32 %v2018, 0.0
        %v2147 = vmax.f32 %v2019, 0.0
        %v2148 = vmax.f32 %v2020, 0.0
        %v2149 = vmax.f32 %v2021, 0.0
        %v2150 = vmax.f32 %v2022, 0.0
        %v2151 = vmax.f32 %v2023, 0.0
        %v2152 = vmax.f32 %v2024, 0.0
        %v2153 = vmax.f32 %v2025, 0.0
        %v2154 = vmax.f32 %v2026, 0.0
        %v2155 = vmax.f32 %v2027, 0.0
        %v2156 = vmax.f32 %v2028, 0.0
        %v2157 = vmax.f32 %v2029, 0.0
        %v2158 = vmax.f32 %v2030, 0.0
        %v2159 = vmax.f32 %v2031, 0.0
        %v2160 = vmax.f32 %v2032, 0.0
        %v2161 = vmax.f32 %v2033, 0.0
        %v2162 = vmax.f32 %v2034, 0.0
        %v2163 = vmax.f32 %v2035, 0.0
        %v2164 = vmax.f32 %v2036, 0.0
        %v2165 = vmax.f32 %v2037, 0.0
        %v2166 = vmax.f32 %v2038, 0.0
        %v2167 = vmax.f32 %v2039, 0.0
        %v2168 = vmax.f32 %v2040, 0.0
        %v2169 = vmax.f32 %v2041, 0.0
        %v2170 = vmax.f32 %v2042, 0.0
        %v2171 = vmax.f32 %v2043, 0.0
        %v2172 = vmax.f32 %v2044, 0.0
        %v2173 = vmax.f32 %v2045, 0.0
        %v2174 = vmax.f32 %v2046, 0.0
        %v2175 = vmax.f32 %v2047, 0.0
        %v2176 = vmax.f32 %v2048, 0.0
        %v2177 = vmax.f32 %v2049, 0.0
        %v2178 = vmax.f32 %v2050, 0.0
        %v2179 = vmax.f32 %v2051, 0.0
        %v2180 = vmax.f32 %v2052, 0.0
        %v2181 = vmax.f32 %v2053, 0.0
        %v2182 = vmax.f32 %v2054, 0.0
        %v2183 = vmax.f32 %v2055, 0.0
        %v2184 = vmax.f32 %v2056, 0.0
        %v2185 = vmax.f32 %v2057, 0.0
        %v2186 = vmax.f32 %v2058, 0.0
        %v2187 = vmax.f32 %v2059, 0.0
        %v2188 = vmax.f32 %v2060, 0.0
        %v2189 = vmax.f32 %v2061, 0.0
        %v2190 = vmax.f32 %v2062, 0.0
        %v2191 = vmax.f32 %v2063, 0.0
        %v2192 = vmax.f32 %v2064, 0.0
        %v2193 = vmax.f32 %v2065, 0.0
        %v2194 = vmax.f32 %v2066, 0.0
        %v2195 = vmax.f32 %v2067, 0.0
        %v2196 = vmax.f32 %v2068, 0.0
        %v2197 = vmax.f32 %v2069, 0.0
        %v2198 = vmax.f32 %v2070, 0.0
        %v2199 = vmax.f32 %v2071, 0.0
        %v2200 = vmax.f32 %v2072, 0.0
        %v2201 = vmax.f32 %v2073, 0.0
        %v2202 = vmax.f32 %v2074, 0.0
        %v2203 = vmax.f32 %v2075, 0.0
        %v2204 = vmax.f32 %v2076, 0.0
        %v2205 = vmax.f32 %v2077, 0.0
        %v2206 = vmax.f32 %v2078, 0.0
        %v2207 = vmax.f32 %v2079, 0.0
        %v2208 = vmax.f32 %v2080, 0.0
        %v2209 = vmax.f32 %v2081, 0.0
        %v2210 = vmax.f32 %v2082, 0.0
        %v2211 = vmax.f32 %v2083, 0.0
        %v2212 = vmax.f32 %v2084, 0.0
        %v2213 = vmax.f32 %v2085, 0.0
        %v2214 = vmax.f32 %v2086, 0.0
        %v2215 = vmax.f32 %v2087, 0.0
        %v2216 = vmax.f32 %v2088, 0.0
        %v2217 = vmax.f32 %v2089, 0.0
        %v2218 = vmax.f32 %v2090, 0.0
        %v2219 = vmax.f32 %v2091, 0.0
        %v2220 = vmax.f32 %v2092, 0.0
        %v2221 = vmax.f32 %v2093, 0.0
        %v2222 = vmax.f32 %v2094, 0.0
        %v2223 = vmax.f32 %v2095, 0.0
        %v2224 = vmax.f32 %v2096, 0.0
        %v2225 = vmax.f32 %v2097, 0.0
        %v2226 = vmax.f32 %v2098, 0.0
        %v2227 = vmax.f32 %v2099, 0.0
        %v2228 = vmax.f32 %v2100, 0.0
        %v2229 = vmax.f32 %v2101, 0.0
        %v2230 = vmax.f32 %v2102, 0.0
        %v2231 = vmax.f32 %v2103, 0.0
        %v2232 = vmax.f32 %v2104, 0.0
        %v2233 = vpack.c.bf16 %v2105, %v2105
        %v2234 = vpack.c.bf16 %v2106, %v2106
        %v2235 = vpack.c.bf16 %v2107, %v2107
        %v2236 = vpack.c.bf16 %v2108, %v2108
        %v2237 = vpack.c.bf16 %v2109, %v2109
        %v2238 = vpack.c.bf16 %v2110, %v2110
        %v2239 = vpack.c.bf16 %v2111, %v2111
        %v2240 = vpack.c.bf16 %v2112, %v2112
        %v2241 = vpack.c.bf16 %v2113, %v2113
        %v2242 = vpack.c.bf16 %v2114, %v2114
        %v2243 = vpack.c.bf16 %v2115, %v2115
        %v2244 = vpack.c.bf16 %v2116, %v2116
        %v2245 = vpack.c.bf16 %v2117, %v2117
        %v2246 = vpack.c.bf16 %v2118, %v2118
        %v2247 = vpack.c.bf16 %v2119, %v2119
        %v2248 = vpack.c.bf16 %v2120, %v2120
        %v2249 = vpack.c.bf16 %v2121, %v2121
        %v2250 = vpack.c.bf16 %v2122, %v2122
        %v2251 = vpack.c.bf16 %v2123, %v2123
        %v2252 = vpack.c.bf16 %v2124, %v2124
        %v2253 = vpack.c.bf16 %v2125, %v2125
        %v2254 = vpack.c.bf16 %v2126, %v2126
        %v2255 = vpack.c.bf16 %v2127, %v2127
        %v2256 = vpack.c.bf16 %v2128, %v2128
        %v2257 = vpack.c.bf16 %v2129, %v2129
        %v2258 = vpack.c.bf16 %v2130, %v2130
        %v2259 = vpack.c.bf16 %v2131, %v2131
        %v2260 = vpack.c.bf16 %v2132, %v2132
        %v2261 = vpack.c.bf16 %v2133, %v2133
        %v2262 = vpack.c.bf16 %v2134, %v2134
        %v2263 = vpack.c.bf16 %v2135, %v2135
        %v2264 = vpack.c.bf16 %v2136, %v2136
        %v2265 = vpack.c.bf16 %v2137, %v2137
        %v2266 = vpack.c.bf16 %v2138, %v2138
        %v2267 = vpack.c.bf16 %v2139, %v2139
        %v2268 = vpack.c.bf16 %v2140, %v2140
        %v2269 = vpack.c.bf16 %v2141, %v2141
        %v2270 = vpack.c.bf16 %v2142, %v2142
        %v2271 = vpack.c.bf16 %v2143, %v2143
        %v2272 = vpack.c.bf16 %v2144, %v2144
        %v2273 = vpack.c.bf16 %v2145, %v2145
        %v2274 = vpack.c.bf16 %v2146, %v2146
        %v2275 = vpack.c.bf16 %v2147, %v2147
        %v2276 = vpack.c.bf16 %v2148, %v2148
        %v2277 = vpack.c.bf16 %v2149, %v2149
        %v2278 = vpack.c.bf16 %v2150, %v2150
        %v2279 = vpack.c.bf16 %v2151, %v2151
        %v2280 = vpack.c.bf16 %v2152, %v2152
        %v2281 = vpack.c.bf16 %v2153, %v2153
        %v2282 = vpack.c.bf16 %v2154, %v2154
        %v2283 = vpack.c.bf16 %v2155, %v2155
        %v2284 = vpack.c.bf16 %v2156, %v2156
        %v2285 = vpack.c.bf16 %v2157, %v2157
        %v2286 = vpack.c.bf16 %v2158, %v2158
        %v2287 = vpack.c.bf16 %v2159, %v2159
        %v2288 = vpack.c.bf16 %v2160, %v2160
        %v2289 = vpack.c.bf16 %v2161, %v2161
        %v2290 = vpack.c.bf16 %v2162, %v2162
        %v2291 = vpack.c.bf16 %v2163, %v2163
        %v2292 = vpack.c.bf16 %v2164, %v2164
        %v2293 = vpack.c.bf16 %v2165, %v2165
        %v2294 = vpack.c.bf16 %v2166, %v2166
        %v2295 = vpack.c.bf16 %v2167, %v2167
        %v2296 = vpack.c.bf16 %v2168, %v2168
        %v2297 = vpack.c.bf16 %v2169, %v2169
        %v2298 = vpack.c.bf16 %v2170, %v2170
        %v2299 = vpack.c.bf16 %v2171, %v2171
        %v2300 = vpack.c.bf16 %v2172, %v2172
        %v2301 = vpack.c.bf16 %v2173, %v2173
        %v2302 = vpack.c.bf16 %v2174, %v2174
        %v2303 = vpack.c.bf16 %v2175, %v2175
        %v2304 = vpack.c.bf16 %v2176, %v2176
        %v2305 = vpack.c.bf16 %v2177, %v2177
        %v2306 = vpack.c.bf16 %v2178, %v2178
        %v2307 = vpack.c.bf16 %v2179, %v2179
        %v2308 = vpack.c.bf16 %v2180, %v2180
        %v2309 = vpack.c.bf16 %v2181, %v2181
        %v2310 = vpack.c.bf16 %v2182, %v2182
        %v2311 = vpack.c.bf16 %v2183, %v2183
        %v2312 = vpack.c.bf16 %v2184, %v2184
        %v2313 = vpack.c.bf16 %v2185, %v2185
        %v2314 = vpack.c.bf16 %v2186, %v2186
        %v2315 = vpack.c.bf16 %v2187, %v2187
        %v2316 = vpack.c.bf16 %v2188, %v2188
        %v2317 = vpack.c.bf16 %v2189, %v2189
        %v2318 = vpack.c.bf16 %v2190, %v2190
        %v2319 = vpack.c.bf16 %v2191, %v2191
        %v2320 = vpack.c.bf16 %v2192, %v2192
        %v2321 = vpack.c.bf16 %v2193, %v2193
        %v2322 = vpack.c.bf16 %v2194, %v2194
        %v2323 = vpack.c.bf16 %v2195, %v2195
        %v2324 = vpack.c.bf16 %v2196, %v2196
        %v2325 = vpack.c.bf16 %v2197, %v2197
        %v2326 = vpack.c.bf16 %v2198, %v2198
        %v2327 = vpack.c.bf16 %v2199, %v2199
        %v2328 = vpack.c.bf16 %v2200, %v2200
        %v2329 = vpack.c.bf16 %v2201, %v2201
        %v2330 = vpack.c.bf16 %v2202, %v2202
        %v2331 = vpack.c.bf16 %v2203, %v2203
        %v2332 = vpack.c.bf16 %v2204, %v2204
        %v2333 = vpack.c.bf16 %v2205, %v2205
        %v2334 = vpack.c.bf16 %v2206, %v2206
        %v2335 = vpack.c.bf16 %v2207, %v2207
        %v2336 = vpack.c.bf16 %v2208, %v2208
        %v2337 = vpack.c.bf16 %v2209, %v2209
        %v2338 = vpack.c.bf16 %v2210, %v2210
        %v2339 = vpack.c.bf16 %v2211, %v2211
        %v2340 = vpack.c.bf16 %v2212, %v2212
        %v2341 = vpack.c.bf16 %v2213, %v2213
        %v2342 = vpack.c.bf16 %v2214, %v2214
        %v2343 = vpack.c.bf16 %v2215, %v2215
        %v2344 = vpack.c.bf16 %v2216, %v2216
        %v2345 = vpack.c.bf16 %v2217, %v2217
        %v2346 = vpack.c.bf16 %v2218, %v2218
        %v2347 = vpack.c.bf16 %v2219, %v2219
        %v2348 = vpack.c.bf16 %v2220, %v2220
        %v2349 = vpack.c.bf16 %v2221, %v2221
        %v2350 = vpack.c.bf16 %v2222, %v2222
        %v2351 = vpack.c.bf16 %v2223, %v2223
        %v2352 = vpack.c.bf16 %v2224, %v2224
        %v2353 = vpack.c.bf16 %v2225, %v2225
        %v2354 = vpack.c.bf16 %v2226, %v2226
        %v2355 = vpack.c.bf16 %v2227, %v2227
        %v2356 = vpack.c.bf16 %v2228, %v2228
        %v2357 = vpack.c.bf16 %v2229, %v2229
        %v2358 = vpack.c.bf16 %v2230, %v2230
        %v2359 = vpack.c.bf16 %v2231, %v2231
        %v2360 = vpack.c.bf16 %v2232, %v2232
        %vm2361 = vcmask 519168
        %2362 = vst.msk [vmem:[%s193] sm:$0xf] %vm2361, %v2233
        %2363 = vst.msk [vmem:[%s193 + $0x4] sm:$0xf] %vm2361, %v2234
        %2364 = vst.msk [vmem:[%s193 + $0x8] sm:$0xf] %vm2361, %v2235
        %2365 = vst.msk [vmem:[%s193 + $0xc] sm:$0xf] %vm2361, %v2236
        %2366 = vst.msk [vmem:[%s193 + $0x10] sm:$0xf] %vm2361, %v2237
        %2367 = vst.msk [vmem:[%s193 + $0x14] sm:$0xf] %vm2361, %v2238
        %2368 = vst.msk [vmem:[%s193 + $0x18] sm:$0xf] %vm2361, %v2239
        %2369 = vst.msk [vmem:[%s193 + $0x1c] sm:$0xf] %vm2361, %v2240
        %2370 = vst.msk [vmem:[%s193 + $0x20] sm:$0xf] %vm2361, %v2241
        %2371 = vst.msk [vmem:[%s193 + $0x24] sm:$0xf] %vm2361, %v2242
        %2372 = vst.msk [vmem:[%s193 + $0x28] sm:$0xf] %vm2361, %v2243
        %2373 = vst.msk [vmem:[%s193 + $0x2c] sm:$0xf] %vm2361, %v2244
        %2374 = vst.msk [vmem:[%s193 + $0x30] sm:$0xf] %vm2361, %v2245
        %2375 = vst.msk [vmem:[%s193 + $0x34] sm:$0xf] %vm2361, %v2246
        %2376 = vst.msk [vmem:[%s193 + $0x38] sm:$0xf] %vm2361, %v2247
        %2377 = vst.msk [vmem:[%s193 + $0x3c] sm:$0xf] %vm2361, %v2248
        %2378 = vst.msk [vmem:[%s193 + $0x40] sm:$0xf] %vm2361, %v2249
        %2379 = vst.msk [vmem:[%s193 + $0x44] sm:$0xf] %vm2361, %v2250
        %2380 = vst.msk [vmem:[%s193 + $0x48] sm:$0xf] %vm2361, %v2251
        %2381 = vst.msk [vmem:[%s193 + $0x4c] sm:$0xf] %vm2361, %v2252
        %2382 = vst.msk [vmem:[%s193 + $0x50] sm:$0xf] %vm2361, %v2253
        %2383 = vst.msk [vmem:[%s193 + $0x54] sm:$0xf] %vm2361, %v2254
        %2384 = vst.msk [vmem:[%s193 + $0x58] sm:$0xf] %vm2361, %v2255
        %2385 = vst.msk [vmem:[%s193 + $0x5c] sm:$0xf] %vm2361, %v2256
        %2386 = vst.msk [vmem:[%s193 + $0x60] sm:$0xf] %vm2361, %v2257
        %2387 = vst.msk [vmem:[%s193 + $0x64] sm:$0xf] %vm2361, %v2258
        %2388 = vst.msk [vmem:[%s193 + $0x68] sm:$0xf] %vm2361, %v2259
        %2389 = vst.msk [vmem:[%s193 + $0x6c] sm:$0xf] %vm2361, %v2260
        %2390 = vst.msk [vmem:[%s193 + $0x70] sm:$0xf] %vm2361, %v2261
        %2391 = vst.msk [vmem:[%s193 + $0x74] sm:$0xf] %vm2361, %v2262
        %2392 = vst.msk [vmem:[%s193 + $0x78] sm:$0xf] %vm2361, %v2263
        %2393 = vst.msk [vmem:[%s193 + $0x7c] sm:$0xf] %vm2361, %v2264
        %2394 = vst.msk [vmem:[%s193 + $0x80] sm:$0xf] %vm2361, %v2265
        %2395 = vst.msk [vmem:[%s193 + $0x84] sm:$0xf] %vm2361, %v2266
        %2396 = vst.msk [vmem:[%s193 + $0x88] sm:$0xf] %vm2361, %v2267
        %2397 = vst.msk [vmem:[%s193 + $0x8c] sm:$0xf] %vm2361, %v2268
        %2398 = vst.msk [vmem:[%s193 + $0x90] sm:$0xf] %vm2361, %v2269
        %2399 = vst.msk [vmem:[%s193 + $0x94] sm:$0xf] %vm2361, %v2270
        %2400 = vst.msk [vmem:[%s193 + $0x98] sm:$0xf] %vm2361, %v2271
        %2401 = vst.msk [vmem:[%s193 + $0x9c] sm:$0xf] %vm2361, %v2272
        %2402 = vst.msk [vmem:[%s193 + $0xa0] sm:$0xf] %vm2361, %v2273
        %2403 = vst.msk [vmem:[%s193 + $0xa4] sm:$0xf] %vm2361, %v2274
        %2404 = vst.msk [vmem:[%s193 + $0xa8] sm:$0xf] %vm2361, %v2275
        %2405 = vst.msk [vmem:[%s193 + $0xac] sm:$0xf] %vm2361, %v2276
        %2406 = vst.msk [vmem:[%s193 + $0xb0] sm:$0xf] %vm2361, %v2277
        %2407 = vst.msk [vmem:[%s193 + $0xb4] sm:$0xf] %vm2361, %v2278
        %2408 = vst.msk [vmem:[%s193 + $0xb8] sm:$0xf] %vm2361, %v2279
        %2409 = vst.msk [vmem:[%s193 + $0xbc] sm:$0xf] %vm2361, %v2280
        %2410 = vst.msk [vmem:[%s193 + $0xc0] sm:$0xf] %vm2361, %v2281
        %2411 = vst.msk [vmem:[%s193 + $0xc4] sm:$0xf] %vm2361, %v2282
        %2412 = vst.msk [vmem:[%s193 + $0xc8] sm:$0xf] %vm2361, %v2283
        %2413 = vst.msk [vmem:[%s193 + $0xcc] sm:$0xf] %vm2361, %v2284
        %2414 = vst.msk [vmem:[%s193 + $0xd0] sm:$0xf] %vm2361, %v2285
        %2415 = vst.msk [vmem:[%s193 + $0xd4] sm:$0xf] %vm2361, %v2286
        %2416 = vst.msk [vmem:[%s193 + $0xd8] sm:$0xf] %vm2361, %v2287
        %2417 = vst.msk [vmem:[%s193 + $0xdc] sm:$0xf] %vm2361, %v2288
        %2418 = vst.msk [vmem:[%s193 + $0xe0] sm:$0xf] %vm2361, %v2289
        %2419 = vst.msk [vmem:[%s193 + $0xe4] sm:$0xf] %vm2361, %v2290
        %2420 = vst.msk [vmem:[%s193 + $0xe8] sm:$0xf] %vm2361, %v2291
        %2421 = vst.msk [vmem:[%s193 + $0xec] sm:$0xf] %vm2361, %v2292
        %2422 = vst.msk [vmem:[%s193 + $0xf0] sm:$0xf] %vm2361, %v2293
        %2423 = vst.msk [vmem:[%s193 + $0xf4] sm:$0xf] %vm2361, %v2294
        %2424 = vst.msk [vmem:[%s193 + $0xf8] sm:$0xf] %vm2361, %v2295
        %2425 = vst.msk [vmem:[%s193 + $0xfc] sm:$0xf] %vm2361, %v2296
        %2426 = vst.msk [vmem:[%s193 + $0x100] sm:$0xf] %vm2361, %v2297
        %2427 = vst.msk [vmem:[%s193 + $0x104] sm:$0xf] %vm2361, %v2298
        %2428 = vst.msk [vmem:[%s193 + $0x108] sm:$0xf] %vm2361, %v2299
        %2429 = vst.msk [vmem:[%s193 + $0x10c] sm:$0xf] %vm2361, %v2300
        %2430 = vst.msk [vmem:[%s193 + $0x110] sm:$0xf] %vm2361, %v2301
        %2431 = vst.msk [vmem:[%s193 + $0x114] sm:$0xf] %vm2361, %v2302
        %2432 = vst.msk [vmem:[%s193 + $0x118] sm:$0xf] %vm2361, %v2303
        %2433 = vst.msk [vmem:[%s193 + $0x11c] sm:$0xf] %vm2361, %v2304
        %2434 = vst.msk [vmem:[%s193 + $0x120] sm:$0xf] %vm2361, %v2305
        %2435 = vst.msk [vmem:[%s193 + $0x124] sm:$0xf] %vm2361, %v2306
        %2436 = vst.msk [vmem:[%s193 + $0x128] sm:$0xf] %vm2361, %v2307
        %2437 = vst.msk [vmem:[%s193 + $0x12c] sm:$0xf] %vm2361, %v2308
        %2438 = vst.msk [vmem:[%s193 + $0x130] sm:$0xf] %vm2361, %v2309
        %2439 = vst.msk [vmem:[%s193 + $0x134] sm:$0xf] %vm2361, %v2310
        %2440 = vst.msk [vmem:[%s193 + $0x138] sm:$0xf] %vm2361, %v2311
        %2441 = vst.msk [vmem:[%s193 + $0x13c] sm:$0xf] %vm2361, %v2312
        %2442 = vst.msk [vmem:[%s193 + $0x140] sm:$0xf] %vm2361, %v2313
        %2443 = vst.msk [vmem:[%s193 + $0x144] sm:$0xf] %vm2361, %v2314
        %2444 = vst.msk [vmem:[%s193 + $0x148] sm:$0xf] %vm2361, %v2315
        %2445 = vst.msk [vmem:[%s193 + $0x14c] sm:$0xf] %vm2361, %v2316
        %2446 = vst.msk [vmem:[%s193 + $0x150] sm:$0xf] %vm2361, %v2317
        %2447 = vst.msk [vmem:[%s193 + $0x154] sm:$0xf] %vm2361, %v2318
        %2448 = vst.msk [vmem:[%s193 + $0x158] sm:$0xf] %vm2361, %v2319
        %2449 = vst.msk [vmem:[%s193 + $0x15c] sm:$0xf] %vm2361, %v2320
        %2450 = vst.msk [vmem:[%s193 + $0x160] sm:$0xf] %vm2361, %v2321
        %2451 = vst.msk [vmem:[%s193 + $0x164] sm:$0xf] %vm2361, %v2322
        %2452 = vst.msk [vmem:[%s193 + $0x168] sm:$0xf] %vm2361, %v2323
        %2453 = vst.msk [vmem:[%s193 + $0x16c] sm:$0xf] %vm2361, %v2324
        %2454 = vst.msk [vmem:[%s193 + $0x170] sm:$0xf] %vm2361, %v2325
        %2455 = vst.msk [vmem:[%s193 + $0x174] sm:$0xf] %vm2361, %v2326
        %2456 = vst.msk [vmem:[%s193 + $0x178] sm:$0xf] %vm2361, %v2327
        %2457 = vst.msk [vmem:[%s193 + $0x17c] sm:$0xf] %vm2361, %v2328
        %2458 = vst.msk [vmem:[%s193 + $0x180] sm:$0xf] %vm2361, %v2329
        %2459 = vst.msk [vmem:[%s193 + $0x184] sm:$0xf] %vm2361, %v2330
        %2460 = vst.msk [vmem:[%s193 + $0x188] sm:$0xf] %vm2361, %v2331
        %2461 = vst.msk [vmem:[%s193 + $0x18c] sm:$0xf] %vm2361, %v2332
        %2462 = vst.msk [vmem:[%s193 + $0x190] sm:$0xf] %vm2361, %v2333
        %2463 = vst.msk [vmem:[%s193 + $0x194] sm:$0xf] %vm2361, %v2334
        %2464 = vst.msk [vmem:[%s193 + $0x198] sm:$0xf] %vm2361, %v2335
        %2465 = vst.msk [vmem:[%s193 + $0x19c] sm:$0xf] %vm2361, %v2336
        %2466 = vst.msk [vmem:[%s193 + $0x1a0] sm:$0xf] %vm2361, %v2337
        %2467 = vst.msk [vmem:[%s193 + $0x1a4] sm:$0xf] %vm2361, %v2338
        %2468 = vst.msk [vmem:[%s193 + $0x1a8] sm:$0xf] %vm2361, %v2339
        %2469 = vst.msk [vmem:[%s193 + $0x1ac] sm:$0xf] %vm2361, %v2340
        %2470 = vst.msk [vmem:[%s193 + $0x1b0] sm:$0xf] %vm2361, %v2341
        %2471 = vst.msk [vmem:[%s193 + $0x1b4] sm:$0xf] %vm2361, %v2342
        %2472 = vst.msk [vmem:[%s193 + $0x1b8] sm:$0xf] %vm2361, %v2343
        %2473 = vst.msk [vmem:[%s193 + $0x1bc] sm:$0xf] %vm2361, %v2344
        %2474 = vst.msk [vmem:[%s193 + $0x1c0] sm:$0xf] %vm2361, %v2345
        %2475 = vst.msk [vmem:[%s193 + $0x1c4] sm:$0xf] %vm2361, %v2346
        %2476 = vst.msk [vmem:[%s193 + $0x1c8] sm:$0xf] %vm2361, %v2347
        %2477 = vst.msk [vmem:[%s193 + $0x1cc] sm:$0xf] %vm2361, %v2348
        %2478 = vst.msk [vmem:[%s193 + $0x1d0] sm:$0xf] %vm2361, %v2349
        %2479 = vst.msk [vmem:[%s193 + $0x1d4] sm:$0xf] %vm2361, %v2350
        %2480 = vst.msk [vmem:[%s193 + $0x1d8] sm:$0xf] %vm2361, %v2351
        %2481 = vst.msk [vmem:[%s193 + $0x1dc] sm:$0xf] %vm2361, %v2352
        %2482 = vst.msk [vmem:[%s193 + $0x1e0] sm:$0xf] %vm2361, %v2353
        %2483 = vst.msk [vmem:[%s193 + $0x1e4] sm:$0xf] %vm2361, %v2354
        %2484 = vst.msk [vmem:[%s193 + $0x1e8] sm:$0xf] %vm2361, %v2355
        %2485 = vst.msk [vmem:[%s193 + $0x1ec] sm:$0xf] %vm2361, %v2356
        %2486 = vst.msk [vmem:[%s193 + $0x1f0] sm:$0xf] %vm2361, %v2357
        %2487 = vst.msk [vmem:[%s193 + $0x1f4] sm:$0xf] %vm2361, %v2358
        %2488 = vst.msk [vmem:[%s193 + $0x1f8] sm:$0xf] %vm2361, %v2359
        %2489 = vst.msk [vmem:[%s193 + $0x1fc] sm:$0xf] %vm2361, %v2360
        %s2490 = sand.u32 %s115, 1
        %s2491 = scalar_lea.sflag [#allocation3], %s2490
        %s2492 = sand.u32 %s115, 1
        %s2493 = smul.addr %s2492, 512
        %s2494 = scalar_lea.vmem [#allocation2], %s2493
        // Predicated region
        $region37: #{_conv_bn_impl.1} parent=35 // pred_check
          %p2495 = pneg %p125
        $region38: #{_conv_bn_impl.1} parent=35 // pred_check_branch
          %2497 = sbr.rel (%p2495) target = $region40
        $region39: #{_conv_bn_impl.1} parent=35 // pred_region
          %s2498 = smul.u32 128, %s18
          %2500 = vsyncadd %s2491, 0
          %s2501 = smul.addr %s2498, 4
          %s2502 = scalar_lea.hbm %s4, %s2501
          %s2503 = sshll.u32 %s2494, 4
          %s2504 = int_to_ptr.vmem [resolvable:$true] %s2503
          %s2505 = sshll.u32 %s2502, 4
          %s2506 = int_to_ptr.hbm [resolvable:$true] %s2505
          %2511 = dma.vmem_to_hbm [thread:$0]  %s2504, 8192, %s2506, %s2491, 64, 64, 4
        $region40: #{_conv_bn_impl.1} parent=35 // pred_fallthru
          _
      $region36: #{_conv_bn_impl.1} parent=5 // pred_fallthru
        _
      %p2512 = scmp.le.s32.totalorder 2, %s13
      // Predicated region
      $region41: #{_conv_bn_impl.1} parent=5 // pred_check
        %p2513 = pneg %p2512
      $region42: #{_conv_bn_impl.1} parent=5 // pred_check_branch
        %2515 = sbr.rel (%p2513) target = $region44
      $region43: #{_conv_bn_impl.1} parent=5 // pred_region
        %s2516 = ssub.s32 %s13, 2
        // Predicated region
        $region45: #{_conv_bn_impl.1} parent=43 // pred_check
          %p2517 = pneg %p131
        $region46: #{_conv_bn_impl.1} parent=43 // pred_check_branch
          %2519 = sbr.rel (%p2517) target = $region48
        $region47: #{_conv_bn_impl.1} parent=43 // pred_region
          %s2520 = sand.u32 %s116, 1
          %s2521 = scalar_lea.sflag [#allocation3], %s2520
          %s2522 = sand.u32 %s116, 1
          %s2523 = smul.addr %s2522, 512
          %s2524 = scalar_lea.vmem [#allocation2], %s2523
          %2526 = dma.done %s2521, 8192
        $region48: #{_conv_bn_impl.1} parent=43 // pred_fallthru
          _
      $region44: #{_conv_bn_impl.1} parent=5 // pred_fallthru
        _
    $region6: #{_conv_bn_impl.1} parent=1 // loop_footer
      %s17 = sadd.s32 1, %s13
    $region7: #{_conv_bn_impl.1} parent=1 // loop_footer_branch
      %12 = sbr.rel target = $region3
    $region8: #{_conv_bn_impl.1} parent=1 // loop_exit
      _
    %2527 = vsyncpa [#allocation3], 1
    %s2528 = scalar_lea.sflag [#allocation3], 1
    %2529 = vsyncpa %s2528, 1

</llo_original>
